<compile_context>
chip_gen: v7x
topology: tpu7x:2x2x1
jax: 0.10.0
libtpu: 0.0.40
codegen_flags: <defaults>
</compile_context>

<pallas_src>
import jax
import jax.numpy as jnp
from jax.experimental import pallas as pl
from jax.experimental.pallas import tpu as pltpu

_EPS = 1e-5
_VMEM_LIMIT = 48 * 1024 * 1024  # explicit scoped-VMEM budget (fits v5e/v6e/v7x)


def make_conv_bn_stats_kernel(H, W, C, pre_affine_relu, compute_dtype):
    """Per-image kernel: [optional BN1-affine + ReLU] -> zero-pad -> 3x3 conv
    (im2col + single MXU matmul) -> raw conv output + per-channel (sum, sum_sq)."""
    M = H * W
    Hp, Wp = H + 2, W + 2

    def kernel(x_ref, a_ref, w_ref, y_ref, s_ref, pad_ref, col_ref):
        # x_ref: (1, M, C); a_ref: (2, C) [scale; shift]; w_ref: (9C, C)
        # y_ref: (1, M, C) raw conv out; s_ref: (1, 2, C) partial stats
        # pad_ref: VMEM (Hp, Wp, C); col_ref: VMEM (M, 9C)
        x = x_ref[...].reshape(M, C)
        if pre_affine_relu:
            # BatchNorm of the previous conv folded to a per-channel affine,
            # followed by ReLU (Conv2dBlock #1 epilogue).
            x = jnp.maximum(x * a_ref[0:1, :] + a_ref[1:2, :], 0.0)

        # Persistent padded scratch: zero the 1-pixel halo, store the interior.
        pad_ref[0:1, :, :] = jnp.zeros((1, Wp, C), jnp.float32)
        pad_ref[Hp - 1:Hp, :, :] = jnp.zeros((1, Wp, C), jnp.float32)
        pad_ref[:, 0:1, :] = jnp.zeros((Hp, 1, C), jnp.float32)
        pad_ref[:, Wp - 1:Wp, :] = jnp.zeros((Hp, 1, C), jnp.float32)
        pad_ref[1:H + 1, 1:W + 1, :] = x.reshape(H, W, C)

        xp = pad_ref[...]                       # (Hp, Wp, C)

        # im2col: tap (kh, kw) occupies lane block [(3*kh+kw)*C, +C).
        for kh in range(3):
            for kw in range(3):
                j = 3 * kh + kw
                col_ref[:, j * C:(j + 1) * C] = (
                    xp[kh:kh + H, kw:kw + W, :].reshape(M, C).astype(compute_dtype))

        # Single matmul, K = 9*C, f32 accumulation on the MXU.
        acc = jnp.dot(col_ref[...], w_ref[...],
                      preferred_element_type=jnp.float32)        # (M, C) f32

        y_ref[...] = acc.reshape(1, M, C)
        # Fused BN statistics for this image (reduced globally in the wrapper).
        s_ref[0, 0:1, :] = jnp.sum(acc, axis=0, keepdims=True)
        s_ref[0, 1:2, :] = jnp.sum(acc * acc, axis=0, keepdims=True)

    return kernel


def make_finalize_kernel(H, W, C):
    """Per-image kernel: BN2 affine + residual add."""
    M = H * W

    def kernel(h2_ref, x_ref, a_ref, o_ref):
        h2 = h2_ref[...].reshape(M, C)
        x = x_ref[...].reshape(M, C)
        out = h2 * a_ref[0:1, :] + a_ref[1:2, :] + x
        o_ref[...] = out.reshape(1, M, C)

    return kernel


def _affine_from_stats(partial, gamma, beta, count):
    """(N,2,C) partial [sum; sum_sq] -> per-channel (scale, shift) for
    training-mode BatchNorm (biased variance, eps=1e-5)."""
    ssum = jnp.sum(partial[:, 0, :], axis=0)
    ssq = jnp.sum(partial[:, 1, :], axis=0)
    mean = ssum / count
    var = ssq / count - mean * mean
    rstd = jax.lax.rsqrt(var + _EPS)
    scale = gamma * rstd
    shift = beta - mean * scale
    return jnp.stack([scale, shift], axis=0).astype(jnp.float32)   # (2, C)


def resblock_forward(x_nchw, params, compute_dtype=jnp.float32):
    """x_nchw: (N, C, H, W) float32. params: PyTorch-convention ResBlock weights.
    Set compute_dtype=jnp.bfloat16 for production channel counts."""
    w1, b1, g1, be1, w2, b2, g2, be2 = params
    del b1, b2  # conv bias before training-mode BatchNorm is exactly cancelled
    N, C, H, W = x_nchw.shape
    M = H * W
    count = float(N * M)

    # NCHW -> per-image (M, C) slabs; weights (Cout,Cin,3,3) -> (9*Cin, Cout).
    x_flat = jnp.transpose(x_nchw, (0, 2, 3, 1)).reshape(N, M, C).astype(jnp.float32)
    w1f = jnp.transpose(w1, (2, 3, 1, 0)).reshape(9 * C, C).astype(compute_dtype)
    w2f = jnp.transpose(w2, (2, 3, 1, 0)).reshape(9 * C, C).astype(compute_dtype)
    identity_affine = jnp.stack(
        [jnp.ones((C,), jnp.float32), jnp.zeros((C,), jnp.float32)], axis=0)

    cparams = pltpu.CompilerParams(
        dimension_semantics=("parallel",),      # batch axis: megacore-shardable
        vmem_limit_bytes=_VMEM_LIMIT)

    def conv_call(kernel, x_in, affine, w_flat):
        return pl.pallas_call(
            kernel,
            out_shape=(jax.ShapeDtypeStruct((N, M, C), jnp.float32),
                       jax.ShapeDtypeStruct((N, 2, C), jnp.float32)),
            grid_spec=pltpu.PrefetchScalarGridSpec(
                num_scalar_prefetch=0,
                grid=(N,),
                in_specs=[pl.BlockSpec((1, M, C), lambda n: (n, 0, 0)),
                          pl.BlockSpec((2, C), lambda n: (0, 0)),
                          pl.BlockSpec((9 * C, C), lambda n: (0, 0))],
                out_specs=[pl.BlockSpec((1, M, C), lambda n: (n, 0, 0)),
                           pl.BlockSpec((1, 2, C), lambda n: (n, 0, 0))],
                scratch_shapes=[pltpu.VMEM((H + 2, W + 2, C), jnp.float32),
                                pltpu.VMEM((M, 9 * C), compute_dtype)]),
            compiler_params=cparams,
        )(x_in, affine, w_flat)

    # Pass 1: conv1 (raw) + per-image partial BN1 stats.
    conv1_kernel = make_conv_bn_stats_kernel(H, W, C, False, compute_dtype)
    h1_raw, s1 = conv_call(conv1_kernel, x_flat, identity_affine, w1f)
    a1 = _affine_from_stats(s1, g1, be1, count)

    # Pass 2: BN1 + ReLU + conv2 (raw) + per-image partial BN2 stats.
    conv2_kernel = make_conv_bn_stats_kernel(H, W, C, True, compute_dtype)
    h2_raw, s2 = conv_call(conv2_kernel, h1_raw, a1, w2f)
    a2 = _affine_from_stats(s2, g2, be2, count)

    # Pass 3: BN2 + residual add.
    out_flat = pl.pallas_call(
        make_finalize_kernel(H, W, C),
        out_shape=jax.ShapeDtypeStruct((N, M, C), jnp.float32),
        grid_spec=pltpu.PrefetchScalarGridSpec(
            num_scalar_prefetch=0,
            grid=(N,),
            in_specs=[pl.BlockSpec((1, M, C), lambda n: (n, 0, 0)),
                      pl.BlockSpec((1, M, C), lambda n: (n, 0, 0)),
                      pl.BlockSpec((2, C), lambda n: (0, 0))],
            out_specs=pl.BlockSpec((1, M, C), lambda n: (n, 0, 0))),
        compiler_params=cparams,
    )(h2_raw, x_flat, a2)

    return jnp.transpose(out_flat.reshape(N, H, W, C), (0, 3, 1, 2))   # NCHW


def resblock_reference(x_nchw, params):
    """Pure-JAX reference of ResBlock.forward (NCHW, training-mode BN, biases kept)."""
    w1, b1, g1, be1, w2, b2, g2, be2 = params

    def conv(x, w, b):
        y = jax.lax.conv_general_dilated(
            x, w, window_strides=(1, 1), padding=((1, 1), (1, 1)),
            dimension_numbers=('NCHW', 'OIHW', 'NCHW'))
        return y + b[None, :, None, None]

    def bn(x, g, be):
        mean = x.mean(axis=(0, 2, 3), keepdims=True)
        var = ((x - mean) ** 2).mean(axis=(0, 2, 3), keepdims=True)
        return ((x - mean) * jax.lax.rsqrt(var + _EPS)
                * g[None, :, None, None] + be[None, :, None, None])

    h = jnp.maximum(bn(conv(x_nchw, w1, b1), g1, be1), 0.0)
    h = bn(conv(h, w2, b2), g2, be2)
    return h + x_nchw


if __name__ == "__main__":
    N, C, H, W = 2, 4, 16, 16     # small shapes; ResBlock(dim=C)
    key = jax.random.PRNGKey(0)
    ks = jax.random.split(key, 9)

    x = jax.random.normal(ks[0], (N, C, H, W), jnp.float32)

    # deterministic synthetic parameters (PyTorch shape conventions)
    w1 = 0.1 * jax.random.normal(ks[1], (C, C, 3, 3), jnp.float32)
    b1 = 0.1 * jax.random.normal(ks[2], (C,), jnp.float32)
    g1 = 1.0 + 0.1 * jax.random.normal(ks[3], (C,), jnp.float32)
    be1 = 0.1 * jax.random.normal(ks[4], (C,), jnp.float32)
    w2 = 0.1 * jax.random.normal(ks[5], (C, C, 3, 3), jnp.float32)
    b2 = 0.1 * jax.random.normal(ks[6], (C,), jnp.float32)
    g2 = 1.0 + 0.1 * jax.random.normal(ks[7], (C,), jnp.float32)
    be2 = 0.1 * jax.random.normal(ks[8], (C,), jnp.float32)
    params = (w1, b1, g1, be1, w2, b2, g2, be2)

    out = resblock_forward(x, params)
    out = jax.block_until_ready(out)

    ref = jax.block_until_ready(resblock_reference(x, params))
    assert out.shape == (N, C, H, W)
    assert jnp.allclose(out, ref, atol=1e-4, rtol=1e-4), (
        float(jnp.max(jnp.abs(out - ref))))

    print("KERNEL_OK")
</pallas_src>

<mosaic_0001>
module attributes {stable_mosaic.version = 11 : i64} {
  func.func @kernel(%arg0: i32, %arg1: memref<1x256x4xf32, #tpu.memory_space<vmem>>, %arg2: memref<2x4xf32, #tpu.memory_space<vmem>>, %arg3: memref<36x4xf32, #tpu.memory_space<vmem>>, %arg4: memref<1x256x4xf32, #tpu.memory_space<vmem>>, %arg5: memref<1x2x4xf32, #tpu.memory_space<vmem>>, %arg6: memref<18x18x4xf32, #tpu.memory_space<vmem>>, %arg7: memref<256x36xf32, #tpu.memory_space<vmem>>) attributes {dimension_semantics = [#tpu.dimension_semantics<parallel>], iteration_bounds = array<i64: 2>, scalar_prefetch = 0 : i64, scratch_operands = 2 : i64, tpu.core_type = #tpu.core_type<tc>, window_params = [{transform_indices = @transform_0, window_bounds = array<i64: 1, 256, 4>}, {pipeline_mode = #tpu.pipeline_mode<synchronous>, transform_indices = @transform_1, window_bounds = array<i64: 2, 4>}, {pipeline_mode = #tpu.pipeline_mode<synchronous>, transform_indices = @transform_2, window_bounds = array<i64: 36, 4>}, {transform_indices = @transform_3, window_bounds = array<i64: 1, 256, 4>}, {transform_indices = @transform_4, window_bounds = array<i64: 1, 2, 4>}]} {
    %c0 = arith.constant 0 : index
    %c0_0 = arith.constant 0 : index
    %c0_1 = arith.constant 0 : index
    %0 = vector.load %arg1[%c0, %c0_0, %c0_1] : memref<1x256x4xf32, #tpu.memory_space<vmem>>, vector<1x256x4xf32>
    %1 = vector.shape_cast %0 : vector<1x256x4xf32> to vector<256x4xf32>
    %cst = arith.constant 0.000000e+00 : f32
    %2 = vector.broadcast %cst : f32 to vector<1x18x4xf32>
    %c0_2 = arith.constant 0 : index
    %c0_3 = arith.constant 0 : index
    %c0_4 = arith.constant 0 : index
    %3 = vector.load %arg6[%c0_2, %c0_3, %c0_4] : memref<18x18x4xf32, #tpu.memory_space<vmem>>, vector<1x18x4xf32>
    tpu.vector_store %arg6[%c0_2, %c0_3, %c0_4], %2 {strides = array<i32>} : memref<18x18x4xf32, #tpu.memory_space<vmem>>, vector<1x18x4xf32>,
    %cst_5 = arith.constant 0.000000e+00 : f32
    %4 = vector.broadcast %cst_5 : f32 to vector<1x18x4xf32>
    %c17 = arith.constant 17 : index
    %c0_6 = arith.constant 0 : index
    %c0_7 = arith.constant 0 : index
    %5 = vector.load %arg6[%c17, %c0_6, %c0_7] : memref<18x18x4xf32, #tpu.memory_space<vmem>>, vector<1x18x4xf32>
    tpu.vector_store %arg6[%c17, %c0_6, %c0_7], %4 {strides = array<i32>} : memref<18x18x4xf32, #tpu.memory_space<vmem>>, vector<1x18x4xf32>,
    %cst_8 = arith.constant 0.000000e+00 : f32
    %6 = vector.broadcast %cst_8 : f32 to vector<18x1x4xf32>
    %c0_9 = arith.constant 0 : index
    %c0_10 = arith.constant 0 : index
    %c0_11 = arith.constant 0 : index
    %7 = vector.load %arg6[%c0_9, %c0_10, %c0_11] : memref<18x18x4xf32, #tpu.memory_space<vmem>>, vector<18x1x4xf32>
    tpu.vector_store %arg6[%c0_9, %c0_10, %c0_11], %6 {strides = array<i32>} : memref<18x18x4xf32, #tpu.memory_space<vmem>>, vector<18x1x4xf32>,
    %cst_12 = arith.constant 0.000000e+00 : f32
    %8 = vector.broadcast %cst_12 : f32 to vector<18x1x4xf32>
    %c0_13 = arith.constant 0 : index
    %c17_14 = arith.constant 17 : index
    %c0_15 = arith.constant 0 : index
    %9 = vector.load %arg6[%c0_13, %c17_14, %c0_15] : memref<18x18x4xf32, #tpu.memory_space<vmem>>, vector<18x1x4xf32>
    tpu.vector_store %arg6[%c0_13, %c17_14, %c0_15], %8 {strides = array<i32>} : memref<18x18x4xf32, #tpu.memory_space<vmem>>, vector<18x1x4xf32>,
    %10 = vector.shape_cast %1 : vector<256x4xf32> to vector<16x16x4xf32>
    %c1 = arith.constant 1 : index
    %c1_16 = arith.constant 1 : index
    %c0_17 = arith.constant 0 : index
    %11 = vector.load %arg6[%c1, %c1_16, %c0_17] : memref<18x18x4xf32, #tpu.memory_space<vmem>>, vector<16x16x4xf32>
    tpu.vector_store %arg6[%c1, %c1_16, %c0_17], %10 {strides = array<i32>} : memref<18x18x4xf32, #tpu.memory_space<vmem>>, vector<16x16x4xf32>,
    %c0_18 = arith.constant 0 : index
    %c0_19 = arith.constant 0 : index
    %c0_20 = arith.constant 0 : index
    %12 = vector.load %arg6[%c0_18, %c0_19, %c0_20] : memref<18x18x4xf32, #tpu.memory_space<vmem>>, vector<18x18x4xf32>
    %13 = vector.extract_strided_slice %12 {offsets = [0, 0, 0], sizes = [16, 16, 4], strides = [1, 1, 1]} : vector<18x18x4xf32> to vector<16x16x4xf32>
    %14 = vector.shape_cast %13 : vector<16x16x4xf32> to vector<256x4xf32>
    %c0_21 = arith.constant 0 : index
    %c0_22 = arith.constant 0 : index
    %15 = vector.load %arg7[%c0_21, %c0_22] : memref<256x36xf32, #tpu.memory_space<vmem>>, vector<256x4xf32>
    tpu.vector_store %arg7[%c0_21, %c0_22], %14 {strides = array<i32>} : memref<256x36xf32, #tpu.memory_space<vmem>>, vector<256x4xf32>,
    %16 = vector.extract_strided_slice %12 {offsets = [0, 1, 0], sizes = [16, 16, 4], strides = [1, 1, 1]} : vector<18x18x4xf32> to vector<16x16x4xf32>
    %17 = vector.shape_cast %16 : vector<16x16x4xf32> to vector<256x4xf32>
    %c0_23 = arith.constant 0 : index
    %c4 = arith.constant 4 : index
    %18 = vector.load %arg7[%c0_23, %c4] : memref<256x36xf32, #tpu.memory_space<vmem>>, vector<256x4xf32>
    tpu.vector_store %arg7[%c0_23, %c4], %17 {strides = array<i32>} : memref<256x36xf32, #tpu.memory_space<vmem>>, vector<256x4xf32>,
    %19 = vector.extract_strided_slice %12 {offsets = [0, 2, 0], sizes = [16, 16, 4], strides = [1, 1, 1]} : vector<18x18x4xf32> to vector<16x16x4xf32>
    %20 = vector.shape_cast %19 : vector<16x16x4xf32> to vector<256x4xf32>
    %c0_24 = arith.constant 0 : index
    %c8 = arith.constant 8 : index
    %21 = vector.load %arg7[%c0_24, %c8] : memref<256x36xf32, #tpu.memory_space<vmem>>, vector<256x4xf32>
    tpu.vector_store %arg7[%c0_24, %c8], %20 {strides = array<i32>} : memref<256x36xf32, #tpu.memory_space<vmem>>, vector<256x4xf32>,
    %22 = vector.extract_strided_slice %12 {offsets = [1, 0, 0], sizes = [16, 16, 4], strides = [1, 1, 1]} : vector<18x18x4xf32> to vector<16x16x4xf32>
    %23 = vector.shape_cast %22 : vector<16x16x4xf32> to vector<256x4xf32>
    %c0_25 = arith.constant 0 : index
    %c12 = arith.constant 12 : index
    %24 = vector.load %arg7[%c0_25, %c12] : memref<256x36xf32, #tpu.memory_space<vmem>>, vector<256x4xf32>
    tpu.vector_store %arg7[%c0_25, %c12], %23 {strides = array<i32>} : memref<256x36xf32, #tpu.memory_space<vmem>>, vector<256x4xf32>,
    %25 = vector.extract_strided_slice %12 {offsets = [1, 1, 0], sizes = [16, 16, 4], strides = [1, 1, 1]} : vector<18x18x4xf32> to vector<16x16x4xf32>
    %26 = vector.shape_cast %25 : vector<16x16x4xf32> to vector<256x4xf32>
    %c0_26 = arith.constant 0 : index
    %c16 = arith.constant 16 : index
    %27 = vector.load %arg7[%c0_26, %c16] : memref<256x36xf32, #tpu.memory_space<vmem>>, vector<256x4xf32>
    tpu.vector_store %arg7[%c0_26, %c16], %26 {strides = array<i32>} : memref<256x36xf32, #tpu.memory_space<vmem>>, vector<256x4xf32>,
    %28 = vector.extract_strided_slice %12 {offsets = [1, 2, 0], sizes = [16, 16, 4], strides = [1, 1, 1]} : vector<18x18x4xf32> to vector<16x16x4xf32>
    %29 = vector.shape_cast %28 : vector<16x16x4xf32> to vector<256x4xf32>
    %c0_27 = arith.constant 0 : index
    %c20 = arith.constant 20 : index
    %30 = vector.load %arg7[%c0_27, %c20] : memref<256x36xf32, #tpu.memory_space<vmem>>, vector<256x4xf32>
    tpu.vector_store %arg7[%c0_27, %c20], %29 {strides = array<i32>} : memref<256x36xf32, #tpu.memory_space<vmem>>, vector<256x4xf32>,
    %31 = vector.extract_strided_slice %12 {offsets = [2, 0, 0], sizes = [16, 16, 4], strides = [1, 1, 1]} : vector<18x18x4xf32> to vector<16x16x4xf32>
    %32 = vector.shape_cast %31 : vector<16x16x4xf32> to vector<256x4xf32>
    %c0_28 = arith.constant 0 : index
    %c24 = arith.constant 24 : index
    %33 = vector.load %arg7[%c0_28, %c24] : memref<256x36xf32, #tpu.memory_space<vmem>>, vector<256x4xf32>
    tpu.vector_store %arg7[%c0_28, %c24], %32 {strides = array<i32>} : memref<256x36xf32, #tpu.memory_space<vmem>>, vector<256x4xf32>,
    %34 = vector.extract_strided_slice %12 {offsets = [2, 1, 0], sizes = [16, 16, 4], strides = [1, 1, 1]} : vector<18x18x4xf32> to vector<16x16x4xf32>
    %35 = vector.shape_cast %34 : vector<16x16x4xf32> to vector<256x4xf32>
    %c0_29 = arith.constant 0 : index
    %c28 = arith.constant 28 : index
    %36 = vector.load %arg7[%c0_29, %c28] : memref<256x36xf32, #tpu.memory_space<vmem>>, vector<256x4xf32>
    tpu.vector_store %arg7[%c0_29, %c28], %35 {strides = array<i32>} : memref<256x36xf32, #tpu.memory_space<vmem>>, vector<256x4xf32>,
    %37 = vector.extract_strided_slice %12 {offsets = [2, 2, 0], sizes = [16, 16, 4], strides = [1, 1, 1]} : vector<18x18x4xf32> to vector<16x16x4xf32>
    %38 = vector.shape_cast %37 : vector<16x16x4xf32> to vector<256x4xf32>
    %c0_30 = arith.constant 0 : index
    %c32 = arith.constant 32 : index
    %39 = vector.load %arg7[%c0_30, %c32] : memref<256x36xf32, #tpu.memory_space<vmem>>, vector<256x4xf32>
    tpu.vector_store %arg7[%c0_30, %c32], %38 {strides = array<i32>} : memref<256x36xf32, #tpu.memory_space<vmem>>, vector<256x4xf32>,
    %c0_31 = arith.constant 0 : index
    %c0_32 = arith.constant 0 : index
    %40 = vector.load %arg7[%c0_31, %c0_32] : memref<256x36xf32, #tpu.memory_space<vmem>>, vector<256x36xf32>
    %c0_33 = arith.constant 0 : index
    %c0_34 = arith.constant 0 : index
    %41 = vector.load %arg3[%c0_33, %c0_34] : memref<36x4xf32, #tpu.memory_space<vmem>>, vector<36x4xf32>
    %cst_35 = arith.constant dense<0.000000e+00> : vector<256x4xf32>
    %42 = tpu.matmul %40, %41, %cst_35 {dimension_numbers = #tpu.dot_dimension_numbers<[1], [0], [0], [1], [0, 0, 1, 1], [], []>} : vector<256x36xf32>, vector<36x4xf32>, vector<256x4xf32> -> vector<256x4xf32>
    %43 = vector.shape_cast %42 : vector<256x4xf32> to vector<1x256x4xf32>
    %c0_36 = arith.constant 0 : index
    %c0_37 = arith.constant 0 : index
    %c0_38 = arith.constant 0 : index
    %44 = vector.load %arg4[%c0_36, %c0_37, %c0_38] : memref<1x256x4xf32, #tpu.memory_space<vmem>>, vector<1x256x4xf32>
    tpu.vector_store %arg4[%c0_36, %c0_37, %c0_38], %43 {strides = array<i32>} : memref<1x256x4xf32, #tpu.memory_space<vmem>>, vector<1x256x4xf32>,
    %cst_39 = arith.constant dense<0.000000e+00> : vector<4xf32>
    %45 = vector.multi_reduction <add>, %42, %cst_39 [0] : vector<256x4xf32> to vector<4xf32>
    %46 = vector.shape_cast %45 : vector<4xf32> to vector<1x4xf32>
    %c0_40 = arith.constant 0 : index
    %c0_41 = arith.constant 0 : index
    %c0_42 = arith.constant 0 : index
    %47 = vector.load %arg5[%c0_40, %c0_41, %c0_42] : memref<1x2x4xf32, #tpu.memory_space<vmem>>, vector<1x1x4xf32>
    %48 = vector.shape_cast %47 : vector<1x1x4xf32> to vector<1x4xf32>
    %49 = vector.shape_cast %46 : vector<1x4xf32> to vector<1x1x4xf32>
    tpu.vector_store %arg5[%c0_40, %c0_41, %c0_42], %49 {strides = array<i32>} : memref<1x2x4xf32, #tpu.memory_space<vmem>>, vector<1x1x4xf32>,
    %50 = arith.mulf %42, %42 : vector<256x4xf32>
    %cst_43 = arith.constant dense<0.000000e+00> : vector<4xf32>
    %51 = vector.multi_reduction <add>, %50, %cst_43 [0] : vector<256x4xf32> to vector<4xf32>
    %52 = vector.shape_cast %51 : vector<4xf32> to vector<1x4xf32>
    %c0_44 = arith.constant 0 : index
    %c1_45 = arith.constant 1 : index
    %c0_46 = arith.constant 0 : index
    %53 = vector.load %arg5[%c0_44, %c1_45, %c0_46] : memref<1x2x4xf32, #tpu.memory_space<vmem>>, vector<1x1x4xf32>
    %54 = vector.shape_cast %53 : vector<1x1x4xf32> to vector<1x4xf32>
    %55 = vector.shape_cast %52 : vector<1x4xf32> to vector<1x1x4xf32>
    tpu.vector_store %arg5[%c0_44, %c1_45, %c0_46], %55 {strides = array<i32>} : memref<1x2x4xf32, #tpu.memory_space<vmem>>, vector<1x1x4xf32>,
    return
  }
  func.func @transform_0(%arg0: i32) -> (i32, i32, i32) {
    %c0_i32 = arith.constant 0 : i32
    %c0_i32_0 = arith.constant 0 : i32
    %c0_i32_1 = arith.constant 0 : i32
    return %arg0, %c0_i32, %c0_i32_0 : i32, i32, i32
  }
  func.func @transform_1(%arg0: i32) -> (i32, i32) {
    %c0_i32 = arith.constant 0 : i32
    %c0_i32_0 = arith.constant 0 : i32
    %c0_i32_1 = arith.constant 0 : i32
    return %c0_i32, %c0_i32_0 : i32, i32
  }
  func.func @transform_2(%arg0: i32) -> (i32, i32) {
    %c0_i32 = arith.constant 0 : i32
    %c0_i32_0 = arith.constant 0 : i32
    %c0_i32_1 = arith.constant 0 : i32
    return %c0_i32, %c0_i32_0 : i32, i32
  }
  func.func @transform_3(%arg0: i32) -> (i32, i32, i32) {
    %c0_i32 = arith.constant 0 : i32
    %c0_i32_0 = arith.constant 0 : i32
    %c0_i32_1 = arith.constant 0 : i32
    return %arg0, %c0_i32, %c0_i32_0 : i32, i32, i32
  }
  func.func @transform_4(%arg0: i32) -> (i32, i32, i32) {
    %c0_i32 = arith.constant 0 : i32
    %c0_i32_0 = arith.constant 0 : i32
    %c0_i32_1 = arith.constant 0 : i32
    return %arg0, %c0_i32, %c0_i32_0 : i32, i32, i32
  }
}

</mosaic_0001>

<llo_original>
// kernel: tpu_custom_call.1
$region0: #{tpu_custom_call.1}
  #allocation0 [shape = 'u32[]', space=smem, size = 0x4, offset = 0x4, fixed_abs, tag = 'smem constant byte address 0x4 - core index']
  #allocation1 [shape = 'u32[144,128]{1,0:T(1,128)}', space=vmem, size = 0x12000, scoped, tag = 'internal scratch']
  #allocation2 [shape = 'f32[18,18,4]{2,1,0:T(8,128)}', space=vmem, size = 0x36000, scoped, tag = 'scratch operand']
  #allocation3 [shape = 'f32[256,36]{1,0:T(8,128)}', space=vmem, size = 0x20000, scoped, tag = 'scratch operand']
  %s0 = inlined_call_operand.vmem [shape: f32[2,256,4], index: 0, kind: input, shape index: {}]
  %s1 = inlined_call_operand.vmem [shape: f32[2,4], index: 1, kind: input, shape index: {}]
  %s2 = inlined_call_operand.vmem [shape: f32[36,4], index: 2, kind: input, shape index: {}]
  %s3 = inlined_call_operand.vmem [shape: f32[2,256,4], index: 3, kind: output, shape index: {0}]
  %s4 = inlined_call_operand.hbm [shape: f32[2,2,4], index: 4, kind: output, shape index: {1}]
  %5 = xla_tuple %s3, %s4
  %s6 = sld [smem:[#allocation0]]
  $region53: #{tpu_custom_call.1} parent=0
    _
  %s8 = ssub.s32 1, %s6
  %s9 = scalar_select 0, %s8, %s6
  $region1: #{tpu_custom_call.1} parent=0
    #allocation4 [shape = 'u8[2048]{0}', space=vmem, size = 0x800, scoped, tag = 'output window, operand 1']
    #allocation5 [shape = 's32[2]{0}', space=sflag, size = 0x8, scoped, tag = 'scoped memory for tpu_custom_call.1']
    %10 = vsyncpa [#allocation5], 0
    %s11 = scalar_lea.sflag [#allocation5], 1
    %12 = vsyncpa %s11, 0
    loop: start=0, step=1, limit=4
    $region2: #{tpu_custom_call.1} parent=1 // loop_pre_header
      _
    $region3: #{tpu_custom_call.1} parent=1 // loop_header
      %s14 = sphi 0, %s18
      %p15 = scmp.ge.s32.totalorder %s14, 4
      %s24 = sphi 0, %s26
      %s27 = sphi 0, %s24
      %s28 = sphi 0, %s27
      %s44 = sphi 0, %s28
      %s48 = sphi 0, %s48
      %s50 = sphi 0, %s48
      %s51 = sphi 0, %s50
      %s65 = sphi 0, %s51
      %s69 = sphi 0, %s69
      %s71 = sphi 0, %s69
      %s72 = sphi 0, %s71
      %s86 = sphi 0, %s72
      %s92 = sphi 0, %s94
      %s95 = sphi 0, %s92
      %s96 = sphi 0, %s95
      %s112 = sphi 0, %s96
      %s118 = sphi 0, %s120
      %s121 = sphi 0, %s118
      %s122 = sphi 0, %s121
      %s138 = sphi 0, %s122
    $region4: #{tpu_custom_call.1} parent=1 // loop_header_branch
      %17 = sbr.rel (%p15) target = $region8
    $region5: #{tpu_custom_call.1} parent=1 // loop_body
      %s19 = ssub.s32 %s14, 1
      %s20 = ssub.s32 %s14, 2
      %s21 = sadd.s32 %s14, 1
      %s22 = ssub.s32 %s14, %s21
      %p23 = scmp.eq.s32.totalorder %s22, 0
      %s25 = sadd.s32 %s24, 1
      %s26 = scalar_select %p23, %s24, %s25
      %p29 = pneg %p23
      %p30 = scmp.eq.s32.totalorder %s14, 1
      %p31 = por %p29, %p30
      %p32 = scmp.ne.s32.totalorder %s24, %s27
      %p33 = scmp.eq.s32.totalorder %s14, 0
      %p34 = por %p32, %p33
      %p35 = scmp.ne.s32.totalorder %s24, %s27
      %p36 = scmp.eq.s32.totalorder %s19, 1
      %p37 = por %p35, %p36
      %p38 = scmp.ne.s32.totalorder %s27, %s28
      %p39 = scmp.eq.s32.totalorder %s19, 0
      %p40 = por %p38, %p39
      %p41 = scmp.ne.s32.totalorder %s27, %s28
      %p42 = scmp.eq.s32.totalorder %s20, 1
      %p43 = por %p41, %p42
      %p45 = scmp.ne.s32.totalorder %s28, %s44
      %p46 = scmp.eq.s32.totalorder %s20, 0
      %p47 = por %p45, %p46
      %s49 = sadd.s32 %s48, 1
      %p52 = scmp.eq.s32.totalorder %s14, 1
      %p53 = scmp.ne.s32.totalorder %s48, %s50
      %p54 = scmp.eq.s32.totalorder %s14, 0
      %p55 = por %p53, %p54
      %p56 = scmp.ne.s32.totalorder %s48, %s50
      %p57 = scmp.eq.s32.totalorder %s19, 1
      %p58 = por %p56, %p57
      %p59 = scmp.ne.s32.totalorder %s50, %s51
      %p60 = scmp.eq.s32.totalorder %s19, 0
      %p61 = por %p59, %p60
      %p62 = scmp.ne.s32.totalorder %s50, %s51
      %p63 = scmp.eq.s32.totalorder %s20, 1
      %p64 = por %p62, %p63
      %p66 = scmp.ne.s32.totalorder %s51, %s65
      %p67 = scmp.eq.s32.totalorder %s20, 0
      %p68 = por %p66, %p67
      %s70 = sadd.s32 %s69, 1
      %p73 = scmp.eq.s32.totalorder %s14, 1
      %p74 = scmp.ne.s32.totalorder %s69, %s71
      %p75 = scmp.eq.s32.totalorder %s14, 0
      %p76 = por %p74, %p75
      %p77 = scmp.ne.s32.totalorder %s69, %s71
      %p78 = scmp.eq.s32.totalorder %s19, 1
      %p79 = por %p77, %p78
      %p80 = scmp.ne.s32.totalorder %s71, %s72
      %p81 = scmp.eq.s32.totalorder %s19, 0
      %p82 = por %p80, %p81
      %p83 = scmp.ne.s32.totalorder %s71, %s72
      %p84 = scmp.eq.s32.totalorder %s20, 1
      %p85 = por %p83, %p84
      %p87 = scmp.ne.s32.totalorder %s72, %s86
      %p88 = scmp.eq.s32.totalorder %s20, 0
      %p89 = por %p87, %p88
      %s90 = ssub.s32 %s14, %s21
      %p91 = scmp.eq.s32.totalorder %s90, 0
      %s93 = sadd.s32 %s92, 1
      %s94 = scalar_select %p91, %s92, %s93
      %p97 = pneg %p91
      %p98 = scmp.eq.s32.totalorder %s14, 1
      %p99 = por %p97, %p98
      %p100 = scmp.ne.s32.totalorder %s92, %s95
      %p101 = scmp.eq.s32.totalorder %s14, 0
      %p102 = por %p100, %p101
      %p103 = scmp.ne.s32.totalorder %s92, %s95
      %p104 = scmp.eq.s32.totalorder %s19, 1
      %p105 = por %p103, %p104
      %p106 = scmp.ne.s32.totalorder %s95, %s96
      %p107 = scmp.eq.s32.totalorder %s19, 0
      %p108 = por %p106, %p107
      %p109 = scmp.ne.s32.totalorder %s95, %s96
      %p110 = scmp.eq.s32.totalorder %s20, 1
      %p111 = por %p109, %p110
      %p113 = scmp.ne.s32.totalorder %s96, %s112
      %p114 = scmp.eq.s32.totalorder %s20, 0
      %p115 = por %p113, %p114
      %s116 = ssub.s32 %s14, %s21
      %p117 = scmp.eq.s32.totalorder %s116, 0
      %s119 = sadd.s32 %s118, 1
      %s120 = scalar_select %p117, %s118, %s119
      %p123 = pneg %p117
      %p124 = scmp.eq.s32.totalorder %s14, 1
      %p125 = por %p123, %p124
      %p126 = scmp.ne.s32.totalorder %s118, %s121
      %p127 = scmp.eq.s32.totalorder %s14, 0
      %p128 = por %p126, %p127
      %p129 = scmp.ne.s32.totalorder %s118, %s121
      %p130 = scmp.eq.s32.totalorder %s19, 1
      %p131 = por %p129, %p130
      %p132 = scmp.ne.s32.totalorder %s121, %s122
      %p133 = scmp.eq.s32.totalorder %s19, 0
      %p134 = por %p132, %p133
      %p135 = scmp.ne.s32.totalorder %s121, %s122
      %p136 = scmp.eq.s32.totalorder %s20, 1
      %p137 = por %p135, %p136
      %p139 = scmp.ne.s32.totalorder %s122, %s138
      %p140 = scmp.eq.s32.totalorder %s20, 0
      %p141 = por %p139, %p140
      %p142 = scmp.le.s32.totalorder 1, %s14
      %p143 = scmp.lt.s32.totalorder %s14, 3
      %p144 = pnand %p142, %p143
      %p145 = pneg %p144
      // Predicated region
      $region9: #{tpu_custom_call.1} parent=5 // pred_check
        _
      $region10: #{tpu_custom_call.1} parent=5 // pred_check_branch
        %147 = sbr.rel (%p144) target = $region12
      $region11: #{tpu_custom_call.1} parent=5 // pred_region
        %s148 = ssub.s32 %s14, 1
        // Predicated region
        $region13: #{tpu_custom_call.1} parent=11 // pred_check
          %p149 = pneg %p61
        $region14: #{tpu_custom_call.1} parent=11 // pred_check_branch
          %151 = sbr.rel (%p149) target = $region16
        $region15: #{tpu_custom_call.1} parent=11 // pred_region
          _
        $region16: #{tpu_custom_call.1} parent=11 // pred_fallthru
          _
        // Predicated region
        $region17: #{tpu_custom_call.1} parent=11 // pred_check
          %p152 = pneg %p82
        $region18: #{tpu_custom_call.1} parent=11 // pred_check_branch
          %154 = sbr.rel (%p152) target = $region20
        $region19: #{tpu_custom_call.1} parent=11 // pred_region
          _
        $region20: #{tpu_custom_call.1} parent=11 // pred_fallthru
          _
      $region12: #{tpu_custom_call.1} parent=5 // pred_fallthru
        _
      %p155 = scmp.lt.s32.totalorder %s14, 2
      // Predicated region
      $region21: #{tpu_custom_call.1} parent=5 // pred_check
        %p156 = pneg %p155
      $region22: #{tpu_custom_call.1} parent=5 // pred_check_branch
        %158 = sbr.rel (%p156) target = $region24
      $region23: #{tpu_custom_call.1} parent=5 // pred_region
        // Predicated region
        $region25: #{tpu_custom_call.1} parent=23 // pred_check
          %p159 = pneg %p34
        $region26: #{tpu_custom_call.1} parent=23 // pred_check_branch
          %161 = sbr.rel (%p159) target = $region28
        $region27: #{tpu_custom_call.1} parent=23 // pred_region
          %p162 = scmp.lt.s32.totalorder %s14, 1
          %s163 = scalar_select %p162, %s14, 1
          %s164 = smul.addr %s163, 32
          %s165 = smul.addr %s164, 8
          %s166 = scalar_lea.vmem %s0, %s165
        $region28: #{tpu_custom_call.1} parent=23 // pred_fallthru
          _
      $region24: #{tpu_custom_call.1} parent=5 // pred_fallthru
        _
      %p167 = scmp.le.s32.totalorder 1, %s14
      %p168 = scmp.lt.s32.totalorder %s14, 3
      %p169 = pnand %p167, %p168
      %p170 = pneg %p169
      // Predicated region
      $region29: #{tpu_custom_call.1} parent=5 // pred_check
        _
      $region30: #{tpu_custom_call.1} parent=5 // pred_check_branch
        %172 = sbr.rel (%p169) target = $region32
      $region31: #{tpu_custom_call.1} parent=5 // pred_region
        %s173 = ssub.s32 %s14, 1
        %p174 = scmp.lt.s32.totalorder %s19, 1
        %s175 = scalar_select %p174, %s19, 1
        %s176 = smul.addr %s175, 32
        %s177 = smul.addr %s176, 8
        %s178 = scalar_lea.vmem %s0, %s177
        %p179 = pneg %p40
        %p180 = pneg %p37
        %p181 = pneg %p61
        %p182 = pneg %p58
        %p183 = pneg %p82
        %p184 = pneg %p79
        %p185 = pneg %p108
        %p186 = pneg %p105
        %p187 = scmp.lt.s32.totalorder %s19, 1
        %s188 = scalar_select %p187, %s19, 1
        %s189 = smul.addr %s188, 32
        %s190 = smul.addr %s189, 8
        %s191 = scalar_lea.vmem %s3, %s190
        %p192 = pneg %p134
        %p193 = pneg %p131
        %s194 = sand.u32 %s121, 1
        %s195 = scalar_lea.sflag [#allocation5], %s194
        %s196 = sand.u32 %s121, 1
        %s197 = smul.addr %s196, 2
        %s198 = scalar_lea.vmem [#allocation4], %s197
        %p199 = scmp.lt.s32.totalorder %s19, 1
        %s200 = scalar_select %p199, %s19, 1
        %s201 = smul.addr %s200, 32
        %s202 = smul.addr %s201, 8
        %s203 = scalar_lea.vmem %s0, %s202
        %p204 = scmp.lt.s32.totalorder %s19, 1
        %s205 = scalar_select %p204, %s19, 1
        %s206 = smul.addr %s205, 32
        %s207 = smul.addr %s206, 8
        %s208 = scalar_lea.vmem %s3, %s207
        %v209 = vld [vmem:[%s203] sm:$0xff]
        %v210 = vld [vmem:[%s203 + $0x8] sm:$0xff]
        %v211 = vld [vmem:[%s203 + $0x10] sm:$0xff]
        %v212 = vld [vmem:[%s203 + $0x18] sm:$0xff]
        %v213 = vld [vmem:[%s203 + $0x20] sm:$0xff]
        %v214 = vld [vmem:[%s203 + $0x28] sm:$0xff]
        %v215 = vld [vmem:[%s203 + $0x30] sm:$0xff]
        %v216 = vld [vmem:[%s203 + $0x38] sm:$0xff]
        %v217 = vld [vmem:[%s203 + $0x40] sm:$0xff]
        %v218 = vld [vmem:[%s203 + $0x48] sm:$0xff]
        %v219 = vld [vmem:[%s203 + $0x50] sm:$0xff]
        %v220 = vld [vmem:[%s203 + $0x58] sm:$0xff]
        %v221 = vld [vmem:[%s203 + $0x60] sm:$0xff]
        %v222 = vld [vmem:[%s203 + $0x68] sm:$0xff]
        %v223 = vld [vmem:[%s203 + $0x70] sm:$0xff]
        %v224 = vld [vmem:[%s203 + $0x78] sm:$0xff]
        %v225 = vld [vmem:[%s203 + $0x80] sm:$0xff]
        %v226 = vld [vmem:[%s203 + $0x88] sm:$0xff]
        %v227 = vld [vmem:[%s203 + $0x90] sm:$0xff]
        %v228 = vld [vmem:[%s203 + $0x98] sm:$0xff]
        %v229 = vld [vmem:[%s203 + $0xa0] sm:$0xff]
        %v230 = vld [vmem:[%s203 + $0xa8] sm:$0xff]
        %v231 = vld [vmem:[%s203 + $0xb0] sm:$0xff]
        %v232 = vld [vmem:[%s203 + $0xb8] sm:$0xff]
        %v233 = vld [vmem:[%s203 + $0xc0] sm:$0xff]
        %v234 = vld [vmem:[%s203 + $0xc8] sm:$0xff]
        %v235 = vld [vmem:[%s203 + $0xd0] sm:$0xff]
        %v236 = vld [vmem:[%s203 + $0xd8] sm:$0xff]
        %v237 = vld [vmem:[%s203 + $0xe0] sm:$0xff]
        %v238 = vld [vmem:[%s203 + $0xe8] sm:$0xff]
        %v239 = vld [vmem:[%s203 + $0xf0] sm:$0xff]
        %v240 = vld [vmem:[%s203 + $0xf8] sm:$0xff]
        %vm241 = vcmask 31744
        %242 = vst.msk [vmem:[#allocation2] sm:$0xff] %vm241, 0.0
        %243 = vst.msk [vmem:[#allocation2 + $0x8] sm:$0xff] %vm241, 0.0
        %vm244 = vcmask 25600
        %245 = vst.msk [vmem:[#allocation2 + $0x10] sm:$0x3] %vm244, 0.0
        %s246 = scalar_lea.vmem [#allocation2], 408
        %247 = vst.msk [vmem:[%s246] sm:$0xff] %vm241, 0.0
        %248 = vst.msk [vmem:[%s246 + $0x8] sm:$0xff] %vm241, 0.0
        %249 = vst.msk [vmem:[%s246 + $0x10] sm:$0x3] %vm244, 0.0
        %vm250 = vcmask 24576
        %251 = vst.msk [vmem:[#allocation2] sm:$0x1] %vm250, 0.0
        %252 = vst.msk [vmem:[#allocation2 + $0x18] sm:$0x1] %vm250, 0.0
        %253 = vst.msk [vmem:[#allocation2 + $0x30] sm:$0x1] %vm250, 0.0
        %254 = vst.msk [vmem:[#allocation2 + $0x48] sm:$0x1] %vm250, 0.0
        %255 = vst.msk [vmem:[#allocation2 + $0x60] sm:$0x1] %vm250, 0.0
        %256 = vst.msk [vmem:[#allocation2 + $0x78] sm:$0x1] %vm250, 0.0
        %257 = vst.msk [vmem:[#allocation2 + $0x90] sm:$0x1] %vm250, 0.0
        %258 = vst.msk [vmem:[#allocation2 + $0xa8] sm:$0x1] %vm250, 0.0
        %259 = vst.msk [vmem:[#allocation2 + $0xc0] sm:$0x1] %vm250, 0.0
        %260 = vst.msk [vmem:[#allocation2 + $0xd8] sm:$0x1] %vm250, 0.0
        %261 = vst.msk [vmem:[#allocation2 + $0xf0] sm:$0x1] %vm250, 0.0
        %262 = vst.msk [vmem:[#allocation2 + $0x108] sm:$0x1] %vm250, 0.0
        %263 = vst.msk [vmem:[#allocation2 + $0x120] sm:$0x1] %vm250, 0.0
        %264 = vst.msk [vmem:[#allocation2 + $0x138] sm:$0x1] %vm250, 0.0
        %265 = vst.msk [vmem:[#allocation2 + $0x150] sm:$0x1] %vm250, 0.0
        %266 = vst.msk [vmem:[#allocation2 + $0x168] sm:$0x1] %vm250, 0.0
        %267 = vst.msk [vmem:[#allocation2 + $0x180] sm:$0x1] %vm250, 0.0
        %268 = vst.msk [vmem:[#allocation2 + $0x198] sm:$0x1] %vm250, 0.0
        %269 = vst.msk [vmem:[#allocation2 + $0x11] sm:$0x1] %vm250, 0.0
        %270 = vst.msk [vmem:[#allocation2 + $0x29] sm:$0x1] %vm250, 0.0
        %271 = vst.msk [vmem:[#allocation2 + $0x41] sm:$0x1] %vm250, 0.0
        %272 = vst.msk [vmem:[#allocation2 + $0x59] sm:$0x1] %vm250, 0.0
        %273 = vst.msk [vmem:[#allocation2 + $0x71] sm:$0x1] %vm250, 0.0
        %274 = vst.msk [vmem:[#allocation2 + $0x89] sm:$0x1] %vm250, 0.0
        %275 = vst.msk [vmem:[#allocation2 + $0xa1] sm:$0x1] %vm250, 0.0
        %276 = vst.msk [vmem:[#allocation2 + $0xb9] sm:$0x1] %vm250, 0.0
        %277 = vst.msk [vmem:[#allocation2 + $0xd1] sm:$0x1] %vm250, 0.0
        %278 = vst.msk [vmem:[#allocation2 + $0xe9] sm:$0x1] %vm250, 0.0
        %279 = vst.msk [vmem:[#allocation2 + $0x101] sm:$0x1] %vm250, 0.0
        %280 = vst.msk [vmem:[#allocation2 + $0x119] sm:$0x1] %vm250, 0.0
        %281 = vst.msk [vmem:[#allocation2 + $0x131] sm:$0x1] %vm250, 0.0
        %282 = vst.msk [vmem:[#allocation2 + $0x149] sm:$0x1] %vm250, 0.0
        %283 = vst.msk [vmem:[#allocation2 + $0x161] sm:$0x1] %vm250, 0.0
        %284 = vst.msk [vmem:[#allocation2 + $0x179] sm:$0x1] %vm250, 0.0
        %285 = vst.msk [vmem:[#allocation2 + $0x191] sm:$0x1] %vm250, 0.0
        %286 = vst.msk [vmem:[#allocation2 + $0x1a9] sm:$0x1] %vm250, 0.0
        %s287 = scalar_lea.vmem [#allocation2], 24
        %288 = vst.msk [vmem:[%s287 + $0x1] sm:$0xff] %vm241, %v209
        %289 = vst.msk [vmem:[%s287 + $0x9] sm:$0xff] %vm241, %v210
        %290 = vst.msk [vmem:[%s287 + $0x19] sm:$0xff] %vm241, %v211
        %291 = vst.msk [vmem:[%s287 + $0x21] sm:$0xff] %vm241, %v212
        %292 = vst.msk [vmem:[%s287 + $0x31] sm:$0xff] %vm241, %v213
        %293 = vst.msk [vmem:[%s287 + $0x39] sm:$0xff] %vm241, %v214
        %294 = vst.msk [vmem:[%s287 + $0x49] sm:$0xff] %vm241, %v215
        %295 = vst.msk [vmem:[%s287 + $0x51] sm:$0xff] %vm241, %v216
        %296 = vst.msk [vmem:[%s287 + $0x61] sm:$0xff] %vm241, %v217
        %297 = vst.msk [vmem:[%s287 + $0x69] sm:$0xff] %vm241, %v218
        %298 = vst.msk [vmem:[%s287 + $0x79] sm:$0xff] %vm241, %v219
        %299 = vst.msk [vmem:[%s287 + $0x81] sm:$0xff] %vm241, %v220
        %300 = vst.msk [vmem:[%s287 + $0x91] sm:$0xff] %vm241, %v221
        %301 = vst.msk [vmem:[%s287 + $0x99] sm:$0xff] %vm241, %v222
        %302 = vst.msk [vmem:[%s287 + $0xa9] sm:$0xff] %vm241, %v223
        %303 = vst.msk [vmem:[%s287 + $0xb1] sm:$0xff] %vm241, %v224
        %304 = vst.msk [vmem:[%s287 + $0xc1] sm:$0xff] %vm241, %v225
        %305 = vst.msk [vmem:[%s287 + $0xc9] sm:$0xff] %vm241, %v226
        %306 = vst.msk [vmem:[%s287 + $0xd9] sm:$0xff] %vm241, %v227
        %307 = vst.msk [vmem:[%s287 + $0xe1] sm:$0xff] %vm241, %v228
        %308 = vst.msk [vmem:[%s287 + $0xf1] sm:$0xff] %vm241, %v229
        %309 = vst.msk [vmem:[%s287 + $0xf9] sm:$0xff] %vm241, %v230
        %310 = vst.msk [vmem:[%s287 + $0x109] sm:$0xff] %vm241, %v231
        %311 = vst.msk [vmem:[%s287 + $0x111] sm:$0xff] %vm241, %v232
        %312 = vst.msk [vmem:[%s287 + $0x121] sm:$0xff] %vm241, %v233
        %313 = vst.msk [vmem:[%s287 + $0x129] sm:$0xff] %vm241, %v234
        %314 = vst.msk [vmem:[%s287 + $0x139] sm:$0xff] %vm241, %v235
        %315 = vst.msk [vmem:[%s287 + $0x141] sm:$0xff] %vm241, %v236
        %316 = vst.msk [vmem:[%s287 + $0x151] sm:$0xff] %vm241, %v237
        %317 = vst.msk [vmem:[%s287 + $0x159] sm:$0xff] %vm241, %v238
        %318 = vst.msk [vmem:[%s287 + $0x169] sm:$0xff] %vm241, %v239
        %319 = vst.msk [vmem:[%s287 + $0x171] sm:$0xff] %vm241, %v240
        %v320 = vld [vmem:[#allocation2] sm:$0xff]
        %v321 = vld [vmem:[#allocation2 + $0x8] sm:$0xff]
        %v322 = vld [vmem:[#allocation2 + $0x10] sm:$0x3]
        %v323 = vld [vmem:[#allocation2 + $0x18] sm:$0xff]
        %v324 = vld [vmem:[#allocation2 + $0x20] sm:$0xff]
        %v325 = vld [vmem:[#allocation2 + $0x28] sm:$0x3]
        %v326 = vld [vmem:[#allocation2 + $0x30] sm:$0xff]
        %v327 = vld [vmem:[#allocation2 + $0x38] sm:$0xff]
        %v328 = vld [vmem:[#allocation2 + $0x40] sm:$0x3]
        %v329 = vld [vmem:[#allocation2 + $0x48] sm:$0xff]
        %v330 = vld [vmem:[#allocation2 + $0x50] sm:$0xff]
        %v331 = vld [vmem:[#allocation2 + $0x58] sm:$0x3]
        %v332 = vld [vmem:[#allocation2 + $0x60] sm:$0xff]
        %v333 = vld [vmem:[#allocation2 + $0x68] sm:$0xff]
        %v334 = vld [vmem:[#allocation2 + $0x70] sm:$0x3]
        %v335 = vld [vmem:[#allocation2 + $0x78] sm:$0xff]
        %v336 = vld [vmem:[#allocation2 + $0x80] sm:$0xff]
        %v337 = vld [vmem:[#allocation2 + $0x88] sm:$0x3]
        %v338 = vld [vmem:[#allocation2 + $0x90] sm:$0xff]
        %v339 = vld [vmem:[#allocation2 + $0x98] sm:$0xff]
        %v340 = vld [vmem:[#allocation2 + $0xa0] sm:$0x3]
        %v341 = vld [vmem:[#allocation2 + $0xa8] sm:$0xff]
        %v342 = vld [vmem:[#allocation2 + $0xb0] sm:$0xff]
        %v343 = vld [vmem:[#allocation2 + $0xb8] sm:$0x3]
        %v344 = vld [vmem:[#allocation2 + $0xc0] sm:$0xff]
        %v345 = vld [vmem:[#allocation2 + $0xc8] sm:$0xff]
        %v346 = vld [vmem:[#allocation2 + $0xd0] sm:$0x3]
        %v347 = vld [vmem:[#allocation2 + $0xd8] sm:$0xff]
        %v348 = vld [vmem:[#allocation2 + $0xe0] sm:$0xff]
        %v349 = vld [vmem:[#allocation2 + $0xe8] sm:$0x3]
        %v350 = vld [vmem:[#allocation2 + $0xf0] sm:$0xff]
        %v351 = vld [vmem:[#allocation2 + $0xf8] sm:$0xff]
        %v352 = vld [vmem:[#allocation2 + $0x100] sm:$0x3]
        %v353 = vld [vmem:[#allocation2 + $0x108] sm:$0xff]
        %v354 = vld [vmem:[#allocation2 + $0x110] sm:$0xff]
        %v355 = vld [vmem:[#allocation2 + $0x118] sm:$0x3]
        %v356 = vld [vmem:[#allocation2 + $0x120] sm:$0xff]
        %v357 = vld [vmem:[#allocation2 + $0x128] sm:$0xff]
        %v358 = vld [vmem:[#allocation2 + $0x130] sm:$0x3]
        %v359 = vld [vmem:[#allocation2 + $0x138] sm:$0xff]
        %v360 = vld [vmem:[#allocation2 + $0x140] sm:$0xff]
        %v361 = vld [vmem:[#allocation2 + $0x148] sm:$0x3]
        %v362 = vld [vmem:[#allocation2 + $0x150] sm:$0xff]
        %v363 = vld [vmem:[#allocation2 + $0x158] sm:$0xff]
        %v364 = vld [vmem:[#allocation2 + $0x160] sm:$0x3]
        %v365 = vld [vmem:[#allocation2 + $0x168] sm:$0xff]
        %v366 = vld [vmem:[#allocation2 + $0x170] sm:$0xff]
        %v367 = vld [vmem:[#allocation2 + $0x178] sm:$0x3]
        %v368 = vld [vmem:[#allocation2 + $0x180] sm:$0xff]
        %v369 = vld [vmem:[#allocation2 + $0x188] sm:$0xff]
        %v370 = vld [vmem:[#allocation2 + $0x190] sm:$0x3]
        %v371 = vld [vmem:[#allocation2 + $0x198] sm:$0xff]
        %v372 = vld [vmem:[#allocation2 + $0x1a0] sm:$0xff]
        %v373 = vld [vmem:[#allocation2 + $0x1a8] sm:$0x3]
        %374 = vst.msk [vmem:[#allocation3] sm:$0xff] %vm241, %v320
        %375 = vst.msk [vmem:[#allocation3 + $0x8] sm:$0xff] %vm241, %v321
        %376 = vst.msk [vmem:[#allocation3 + $0x10] sm:$0xff] %vm241, %v323
        %377 = vst.msk [vmem:[#allocation3 + $0x18] sm:$0xff] %vm241, %v324
        %378 = vst.msk [vmem:[#allocation3 + $0x20] sm:$0xff] %vm241, %v326
        %379 = vst.msk [vmem:[#allocation3 + $0x28] sm:$0xff] %vm241, %v327
        %380 = vst.msk [vmem:[#allocation3 + $0x30] sm:$0xff] %vm241, %v329
        %381 = vst.msk [vmem:[#allocation3 + $0x38] sm:$0xff] %vm241, %v330
        %382 = vst.msk [vmem:[#allocation3 + $0x40] sm:$0xff] %vm241, %v332
        %383 = vst.msk [vmem:[#allocation3 + $0x48] sm:$0xff] %vm241, %v333
        %384 = vst.msk [vmem:[#allocation3 + $0x50] sm:$0xff] %vm241, %v335
        %385 = vst.msk [vmem:[#allocation3 + $0x58] sm:$0xff] %vm241, %v336
        %386 = vst.msk [vmem:[#allocation3 + $0x60] sm:$0xff] %vm241, %v338
        %387 = vst.msk [vmem:[#allocation3 + $0x68] sm:$0xff] %vm241, %v339
        %388 = vst.msk [vmem:[#allocation3 + $0x70] sm:$0xff] %vm241, %v341
        %389 = vst.msk [vmem:[#allocation3 + $0x78] sm:$0xff] %vm241, %v342
        %390 = vst.msk [vmem:[#allocation3 + $0x80] sm:$0xff] %vm241, %v344
        %391 = vst.msk [vmem:[#allocation3 + $0x88] sm:$0xff] %vm241, %v345
        %392 = vst.msk [vmem:[#allocation3 + $0x90] sm:$0xff] %vm241, %v347
        %393 = vst.msk [vmem:[#allocation3 + $0x98] sm:$0xff] %vm241, %v348
        %394 = vst.msk [vmem:[#allocation3 + $0xa0] sm:$0xff] %vm241, %v350
        %395 = vst.msk [vmem:[#allocation3 + $0xa8] sm:$0xff] %vm241, %v351
        %396 = vst.msk [vmem:[#allocation3 + $0xb0] sm:$0xff] %vm241, %v353
        %397 = vst.msk [vmem:[#allocation3 + $0xb8] sm:$0xff] %vm241, %v354
        %398 = vst.msk [vmem:[#allocation3 + $0xc0] sm:$0xff] %vm241, %v356
        %399 = vst.msk [vmem:[#allocation3 + $0xc8] sm:$0xff] %vm241, %v357
        %400 = vst.msk [vmem:[#allocation3 + $0xd0] sm:$0xff] %vm241, %v359
        %401 = vst.msk [vmem:[#allocation3 + $0xd8] sm:$0xff] %vm241, %v360
        %402 = vst.msk [vmem:[#allocation3 + $0xe0] sm:$0xff] %vm241, %v362
        %403 = vst.msk [vmem:[#allocation3 + $0xe8] sm:$0xff] %vm241, %v363
        %404 = vst.msk [vmem:[#allocation3 + $0xf0] sm:$0xff] %vm241, %v365
        %405 = vst.msk [vmem:[#allocation3 + $0xf8] sm:$0xff] %vm241, %v366
        %vm454 = vcmask 1046528
        %v455 = vrot.slane %v320, 1
        %v456 = vrot.slane %v321, 1
        %v457 = vsel %vm454, %v455, %v456
        %v458 = vrot.slane %v322, 1
        %v459 = vsel %vm454, %v456, %v458
        %v460 = vrot.slane %v323, 1
        %v461 = vrot.slane %v324, 1
        %v462 = vsel %vm454, %v460, %v461
        %v463 = vrot.slane %v325, 1
        %v464 = vsel %vm454, %v461, %v463
        %v465 = vrot.slane %v326, 1
        %v466 = vrot.slane %v327, 1
        %v467 = vsel %vm454, %v465, %v466
        %v468 = vrot.slane %v328, 1
        %v469 = vsel %vm454, %v466, %v468
        %v470 = vrot.slane %v329, 1
        %v471 = vrot.slane %v330, 1
        %v472 = vsel %vm454, %v470, %v471
        %v473 = vrot.slane %v331, 1
        %v474 = vsel %vm454, %v471, %v473
        %v475 = vrot.slane %v332, 1
        %v476 = vrot.slane %v333, 1
        %v477 = vsel %vm454, %v475, %v476
        %v478 = vrot.slane %v334, 1
        %v479 = vsel %vm454, %v476, %v478
        %v480 = vrot.slane %v335, 1
        %v481 = vrot.slane %v336, 1
        %v482 = vsel %vm454, %v480, %v481
        %v483 = vrot.slane %v337, 1
        %v484 = vsel %vm454, %v481, %v483
        %v485 = vrot.slane %v338, 1
        %v486 = vrot.slane %v339, 1
        %v487 = vsel %vm454, %v485, %v486
        %v488 = vrot.slane %v340, 1
        %v489 = vsel %vm454, %v486, %v488
        %v490 = vrot.slane %v341, 1
        %v491 = vrot.slane %v342, 1
        %v492 = vsel %vm454, %v490, %v491
        %v493 = vrot.slane %v343, 1
        %v494 = vsel %vm454, %v491, %v493
        %v495 = vrot.slane %v344, 1
        %v496 = vrot.slane %v345, 1
        %v497 = vsel %vm454, %v495, %v496
        %v498 = vrot.slane %v346, 1
        %v499 = vsel %vm454, %v496, %v498
        %v500 = vrot.slane %v347, 1
        %v501 = vrot.slane %v348, 1
        %v502 = vsel %vm454, %v500, %v501
        %v503 = vrot.slane %v349, 1
        %v504 = vsel %vm454, %v501, %v503
        %v505 = vrot.slane %v350, 1
        %v506 = vrot.slane %v351, 1
        %v507 = vsel %vm454, %v505, %v506
        %v508 = vrot.slane %v352, 1
        %v509 = vsel %vm454, %v506, %v508
        %v510 = vrot.slane %v353, 1
        %v511 = vrot.slane %v354, 1
        %v512 = vsel %vm454, %v510, %v511
        %v513 = vrot.slane %v355, 1
        %v514 = vsel %vm454, %v511, %v513
        %v515 = vrot.slane %v356, 1
        %v516 = vrot.slane %v357, 1
        %v517 = vsel %vm454, %v515, %v516
        %v518 = vrot.slane %v358, 1
        %v519 = vsel %vm454, %v516, %v518
        %v520 = vrot.slane %v359, 1
        %v521 = vrot.slane %v360, 1
        %v522 = vsel %vm454, %v520, %v521
        %v523 = vrot.slane %v361, 1
        %v524 = vsel %vm454, %v521, %v523
        %v525 = vrot.slane %v362, 1
        %v526 = vrot.slane %v363, 1
        %v527 = vsel %vm454, %v525, %v526
        %v528 = vrot.slane %v364, 1
        %v529 = vsel %vm454, %v526, %v528
        %v530 = vrot.slane %v365, 1
        %v531 = vrot.slane %v366, 1
        %v532 = vsel %vm454, %v530, %v531
        %v533 = vrot.slane %v367, 1
        %v534 = vsel %vm454, %v531, %v533
        %535 = vrot.lane.b32.xlu0 %v457, 4
        %v536 = vpop.permute.xlu0 %535
        %537 = vrot.lane.b32.xlu0 %v459, 4
        %v538 = vpop.permute.xlu0 %537
        %539 = vrot.lane.b32.xlu0 %v462, 4
        %v540 = vpop.permute.xlu0 %539
        %541 = vrot.lane.b32.xlu0 %v464, 4
        %v542 = vpop.permute.xlu0 %541
        %543 = vrot.lane.b32.xlu0 %v467, 4
        %v544 = vpop.permute.xlu0 %543
        %545 = vrot.lane.b32.xlu0 %v469, 4
        %v546 = vpop.permute.xlu0 %545
        %547 = vrot.lane.b32.xlu0 %v472, 4
        %v548 = vpop.permute.xlu0 %547
        %549 = vrot.lane.b32.xlu0 %v474, 4
        %v550 = vpop.permute.xlu0 %549
        %551 = vrot.lane.b32.xlu0 %v477, 4
        %v552 = vpop.permute.xlu0 %551
        %553 = vrot.lane.b32.xlu0 %v479, 4
        %v554 = vpop.permute.xlu0 %553
        %555 = vrot.lane.b32.xlu0 %v482, 4
        %v556 = vpop.permute.xlu0 %555
        %557 = vrot.lane.b32.xlu0 %v484, 4
        %v558 = vpop.permute.xlu0 %557
        %559 = vrot.lane.b32.xlu0 %v487, 4
        %v560 = vpop.permute.xlu0 %559
        %561 = vrot.lane.b32.xlu0 %v489, 4
        %v562 = vpop.permute.xlu0 %561
        %563 = vrot.lane.b32.xlu0 %v492, 4
        %v564 = vpop.permute.xlu0 %563
        %565 = vrot.lane.b32.xlu0 %v494, 4
        %v566 = vpop.permute.xlu0 %565
        %567 = vrot.lane.b32.xlu0 %v497, 4
        %v568 = vpop.permute.xlu0 %567
        %569 = vrot.lane.b32.xlu0 %v499, 4
        %v570 = vpop.permute.xlu0 %569
        %571 = vrot.lane.b32.xlu0 %v502, 4
        %v572 = vpop.permute.xlu0 %571
        %573 = vrot.lane.b32.xlu0 %v504, 4
        %v574 = vpop.permute.xlu0 %573
        %575 = vrot.lane.b32.xlu0 %v507, 4
        %v576 = vpop.permute.xlu0 %575
        %577 = vrot.lane.b32.xlu0 %v509, 4
        %v578 = vpop.permute.xlu0 %577
        %579 = vrot.lane.b32.xlu0 %v512, 4
        %v580 = vpop.permute.xlu0 %579
        %581 = vrot.lane.b32.xlu0 %v514, 4
        %v582 = vpop.permute.xlu0 %581
        %583 = vrot.lane.b32.xlu0 %v517, 4
        %v584 = vpop.permute.xlu0 %583
        %585 = vrot.lane.b32.xlu0 %v519, 4
        %v586 = vpop.permute.xlu0 %585
        %587 = vrot.lane.b32.xlu0 %v522, 4
        %v588 = vpop.permute.xlu0 %587
        %589 = vrot.lane.b32.xlu0 %v524, 4
        %v590 = vpop.permute.xlu0 %589
        %591 = vrot.lane.b32.xlu0 %v527, 4
        %v592 = vpop.permute.xlu0 %591
        %593 = vrot.lane.b32.xlu0 %v529, 4
        %v594 = vpop.permute.xlu0 %593
        %595 = vrot.lane.b32.xlu0 %v532, 4
        %v596 = vpop.permute.xlu0 %595
        %597 = vrot.lane.b32.xlu0 %v534, 4
        %v598 = vpop.permute.xlu0 %597
        %vm631 = vcmask 64544
        %632 = vst.msk [vmem:[#allocation3] sm:$0xff] %vm631, %v536
        %633 = vst.msk [vmem:[#allocation3 + $0x8] sm:$0xff] %vm631, %v538
        %634 = vst.msk [vmem:[#allocation3 + $0x10] sm:$0xff] %vm631, %v540
        %635 = vst.msk [vmem:[#allocation3 + $0x18] sm:$0xff] %vm631, %v542
        %636 = vst.msk [vmem:[#allocation3 + $0x20] sm:$0xff] %vm631, %v544
        %637 = vst.msk [vmem:[#allocation3 + $0x28] sm:$0xff] %vm631, %v546
        %638 = vst.msk [vmem:[#allocation3 + $0x30] sm:$0xff] %vm631, %v548
        %639 = vst.msk [vmem:[#allocation3 + $0x38] sm:$0xff] %vm631, %v550
        %640 = vst.msk [vmem:[#allocation3 + $0x40] sm:$0xff] %vm631, %v552
        %641 = vst.msk [vmem:[#allocation3 + $0x48] sm:$0xff] %vm631, %v554
        %642 = vst.msk [vmem:[#allocation3 + $0x50] sm:$0xff] %vm631, %v556
        %643 = vst.msk [vmem:[#allocation3 + $0x58] sm:$0xff] %vm631, %v558
        %644 = vst.msk [vmem:[#allocation3 + $0x60] sm:$0xff] %vm631, %v560
        %645 = vst.msk [vmem:[#allocation3 + $0x68] sm:$0xff] %vm631, %v562
        %646 = vst.msk [vmem:[#allocation3 + $0x70] sm:$0xff] %vm631, %v564
        %647 = vst.msk [vmem:[#allocation3 + $0x78] sm:$0xff] %vm631, %v566
        %648 = vst.msk [vmem:[#allocation3 + $0x80] sm:$0xff] %vm631, %v568
        %649 = vst.msk [vmem:[#allocation3 + $0x88] sm:$0xff] %vm631, %v570
        %650 = vst.msk [vmem:[#allocation3 + $0x90] sm:$0xff] %vm631, %v572
        %651 = vst.msk [vmem:[#allocation3 + $0x98] sm:$0xff] %vm631, %v574
        %652 = vst.msk [vmem:[#allocation3 + $0xa0] sm:$0xff] %vm631, %v576
        %653 = vst.msk [vmem:[#allocation3 + $0xa8] sm:$0xff] %vm631, %v578
        %654 = vst.msk [vmem:[#allocation3 + $0xb0] sm:$0xff] %vm631, %v580
        %655 = vst.msk [vmem:[#allocation3 + $0xb8] sm:$0xff] %vm631, %v582
        %656 = vst.msk [vmem:[#allocation3 + $0xc0] sm:$0xff] %vm631, %v584
        %657 = vst.msk [vmem:[#allocation3 + $0xc8] sm:$0xff] %vm631, %v586
        %658 = vst.msk [vmem:[#allocation3 + $0xd0] sm:$0xff] %vm631, %v588
        %659 = vst.msk [vmem:[#allocation3 + $0xd8] sm:$0xff] %vm631, %v590
        %660 = vst.msk [vmem:[#allocation3 + $0xe0] sm:$0xff] %vm631, %v592
        %661 = vst.msk [vmem:[#allocation3 + $0xe8] sm:$0xff] %vm631, %v594
        %662 = vst.msk [vmem:[#allocation3 + $0xf0] sm:$0xff] %vm631, %v596
        %663 = vst.msk [vmem:[#allocation3 + $0xf8] sm:$0xff] %vm631, %v598
        %vm664 = vcmask 1045504
        %v665 = vrot.slane %v320, 2
        %v666 = vrot.slane %v321, 2
        %v667 = vsel %vm664, %v665, %v666
        %v668 = vrot.slane %v322, 2
        %v669 = vsel %vm664, %v666, %v668
        %v670 = vrot.slane %v323, 2
        %v671 = vrot.slane %v324, 2
        %v672 = vsel %vm664, %v670, %v671
        %v673 = vrot.slane %v325, 2
        %v674 = vsel %vm664, %v671, %v673
        %v675 = vrot.slane %v326, 2
        %v676 = vrot.slane %v327, 2
        %v677 = vsel %vm664, %v675, %v676
        %v678 = vrot.slane %v328, 2
        %v679 = vsel %vm664, %v676, %v678
        %v680 = vrot.slane %v329, 2
        %v681 = vrot.slane %v330, 2
        %v682 = vsel %vm664, %v680, %v681
        %v683 = vrot.slane %v331, 2
        %v684 = vsel %vm664, %v681, %v683
        %v685 = vrot.slane %v332, 2
        %v686 = vrot.slane %v333, 2
        %v687 = vsel %vm664, %v685, %v686
        %v688 = vrot.slane %v334, 2
        %v689 = vsel %vm664, %v686, %v688
        %v690 = vrot.slane %v335, 2
        %v691 = vrot.slane %v336, 2
        %v692 = vsel %vm664, %v690, %v691
        %v693 = vrot.slane %v337, 2
        %v694 = vsel %vm664, %v691, %v693
        %v695 = vrot.slane %v338, 2
        %v696 = vrot.slane %v339, 2
        %v697 = vsel %vm664, %v695, %v696
        %v698 = vrot.slane %v340, 2
        %v699 = vsel %vm664, %v696, %v698
        %v700 = vrot.slane %v341, 2
        %v701 = vrot.slane %v342, 2
        %v702 = vsel %vm664, %v700, %v701
        %v703 = vrot.slane %v343, 2
        %v704 = vsel %vm664, %v701, %v703
        %v705 = vrot.slane %v344, 2
        %v706 = vrot.slane %v345, 2
        %v707 = vsel %vm664, %v705, %v706
        %v708 = vrot.slane %v346, 2
        %v709 = vsel %vm664, %v706, %v708
        %v710 = vrot.slane %v347, 2
        %v711 = vrot.slane %v348, 2
        %v712 = vsel %vm664, %v710, %v711
        %v713 = vrot.slane %v349, 2
        %v714 = vsel %vm664, %v711, %v713
        %v715 = vrot.slane %v350, 2
        %v716 = vrot.slane %v351, 2
        %v717 = vsel %vm664, %v715, %v716
        %v718 = vrot.slane %v352, 2
        %v719 = vsel %vm664, %v716, %v718
        %v720 = vrot.slane %v353, 2
        %v721 = vrot.slane %v354, 2
        %v722 = vsel %vm664, %v720, %v721
        %v723 = vrot.slane %v355, 2
        %v724 = vsel %vm664, %v721, %v723
        %v725 = vrot.slane %v356, 2
        %v726 = vrot.slane %v357, 2
        %v727 = vsel %vm664, %v725, %v726
        %v728 = vrot.slane %v358, 2
        %v729 = vsel %vm664, %v726, %v728
        %v730 = vrot.slane %v359, 2
        %v731 = vrot.slane %v360, 2
        %v732 = vsel %vm664, %v730, %v731
        %v733 = vrot.slane %v361, 2
        %v734 = vsel %vm664, %v731, %v733
        %v735 = vrot.slane %v362, 2
        %v736 = vrot.slane %v363, 2
        %v737 = vsel %vm664, %v735, %v736
        %v738 = vrot.slane %v364, 2
        %v739 = vsel %vm664, %v736, %v738
        %v740 = vrot.slane %v365, 2
        %v741 = vrot.slane %v366, 2
        %v742 = vsel %vm664, %v740, %v741
        %v743 = vrot.slane %v367, 2
        %v744 = vsel %vm664, %v741, %v743
        %745 = vrot.lane.b32.xlu0 %v667, 8
        %v746 = vpop.permute.xlu0 %745
        %747 = vrot.lane.b32.xlu0 %v669, 8
        %v748 = vpop.permute.xlu0 %747
        %749 = vrot.lane.b32.xlu0 %v672, 8
        %v750 = vpop.permute.xlu0 %749
        %751 = vrot.lane.b32.xlu0 %v674, 8
        %v752 = vpop.permute.xlu0 %751
        %753 = vrot.lane.b32.xlu0 %v677, 8
        %v754 = vpop.permute.xlu0 %753
        %755 = vrot.lane.b32.xlu0 %v679, 8
        %v756 = vpop.permute.xlu0 %755
        %757 = vrot.lane.b32.xlu0 %v682, 8
        %v758 = vpop.permute.xlu0 %757
        %759 = vrot.lane.b32.xlu0 %v684, 8
        %v760 = vpop.permute.xlu0 %759
        %761 = vrot.lane.b32.xlu0 %v687, 8
        %v762 = vpop.permute.xlu0 %761
        %763 = vrot.lane.b32.xlu0 %v689, 8
        %v764 = vpop.permute.xlu0 %763
        %765 = vrot.lane.b32.xlu0 %v692, 8
        %v766 = vpop.permute.xlu0 %765
        %767 = vrot.lane.b32.xlu0 %v694, 8
        %v768 = vpop.permute.xlu0 %767
        %769 = vrot.lane.b32.xlu0 %v697, 8
        %v770 = vpop.permute.xlu0 %769
        %771 = vrot.lane.b32.xlu0 %v699, 8
        %v772 = vpop.permute.xlu0 %771
        %773 = vrot.lane.b32.xlu0 %v702, 8
        %v774 = vpop.permute.xlu0 %773
        %775 = vrot.lane.b32.xlu0 %v704, 8
        %v776 = vpop.permute.xlu0 %775
        %777 = vrot.lane.b32.xlu0 %v707, 8
        %v778 = vpop.permute.xlu0 %777
        %779 = vrot.lane.b32.xlu0 %v709, 8
        %v780 = vpop.permute.xlu0 %779
        %781 = vrot.lane.b32.xlu0 %v712, 8
        %v782 = vpop.permute.xlu0 %781
        %783 = vrot.lane.b32.xlu0 %v714, 8
        %v784 = vpop.permute.xlu0 %783
        %785 = vrot.lane.b32.xlu0 %v717, 8
        %v786 = vpop.permute.xlu0 %785
        %787 = vrot.lane.b32.xlu0 %v719, 8
        %v788 = vpop.permute.xlu0 %787
        %789 = vrot.lane.b32.xlu0 %v722, 8
        %v790 = vpop.permute.xlu0 %789
        %791 = vrot.lane.b32.xlu0 %v724, 8
        %v792 = vpop.permute.xlu0 %791
        %793 = vrot.lane.b32.xlu0 %v727, 8
        %v794 = vpop.permute.xlu0 %793
        %795 = vrot.lane.b32.xlu0 %v729, 8
        %v796 = vpop.permute.xlu0 %795
        %797 = vrot.lane.b32.xlu0 %v732, 8
        %v798 = vpop.permute.xlu0 %797
        %799 = vrot.lane.b32.xlu0 %v734, 8
        %v800 = vpop.permute.xlu0 %799
        %801 = vrot.lane.b32.xlu0 %v737, 8
        %v802 = vpop.permute.xlu0 %801
        %803 = vrot.lane.b32.xlu0 %v739, 8
        %v804 = vpop.permute.xlu0 %803
        %805 = vrot.lane.b32.xlu0 %v742, 8
        %v806 = vpop.permute.xlu0 %805
        %807 = vrot.lane.b32.xlu0 %v744, 8
        %v808 = vpop.permute.xlu0 %807
        %vm841 = vcmask 97344
        %842 = vst.msk [vmem:[#allocation3] sm:$0xff] %vm841, %v746
        %843 = vst.msk [vmem:[#allocation3 + $0x8] sm:$0xff] %vm841, %v748
        %844 = vst.msk [vmem:[#allocation3 + $0x10] sm:$0xff] %vm841, %v750
        %845 = vst.msk [vmem:[#allocation3 + $0x18] sm:$0xff] %vm841, %v752
        %846 = vst.msk [vmem:[#allocation3 + $0x20] sm:$0xff] %vm841, %v754
        %847 = vst.msk [vmem:[#allocation3 + $0x28] sm:$0xff] %vm841, %v756
        %848 = vst.msk [vmem:[#allocation3 + $0x30] sm:$0xff] %vm841, %v758
        %849 = vst.msk [vmem:[#allocation3 + $0x38] sm:$0xff] %vm841, %v760
        %850 = vst.msk [vmem:[#allocation3 + $0x40] sm:$0xff] %vm841, %v762
        %851 = vst.msk [vmem:[#allocation3 + $0x48] sm:$0xff] %vm841, %v764
        %852 = vst.msk [vmem:[#allocation3 + $0x50] sm:$0xff] %vm841, %v766
        %853 = vst.msk [vmem:[#allocation3 + $0x58] sm:$0xff] %vm841, %v768
        %854 = vst.msk [vmem:[#allocation3 + $0x60] sm:$0xff] %vm841, %v770
        %855 = vst.msk [vmem:[#allocation3 + $0x68] sm:$0xff] %vm841, %v772
        %856 = vst.msk [vmem:[#allocation3 + $0x70] sm:$0xff] %vm841, %v774
        %857 = vst.msk [vmem:[#allocation3 + $0x78] sm:$0xff] %vm841, %v776
        %858 = vst.msk [vmem:[#allocation3 + $0x80] sm:$0xff] %vm841, %v778
        %859 = vst.msk [vmem:[#allocation3 + $0x88] sm:$0xff] %vm841, %v780
        %860 = vst.msk [vmem:[#allocation3 + $0x90] sm:$0xff] %vm841, %v782
        %861 = vst.msk [vmem:[#allocation3 + $0x98] sm:$0xff] %vm841, %v784
        %862 = vst.msk [vmem:[#allocation3 + $0xa0] sm:$0xff] %vm841, %v786
        %863 = vst.msk [vmem:[#allocation3 + $0xa8] sm:$0xff] %vm841, %v788
        %864 = vst.msk [vmem:[#allocation3 + $0xb0] sm:$0xff] %vm841, %v790
        %865 = vst.msk [vmem:[#allocation3 + $0xb8] sm:$0xff] %vm841, %v792
        %866 = vst.msk [vmem:[#allocation3 + $0xc0] sm:$0xff] %vm841, %v794
        %867 = vst.msk [vmem:[#allocation3 + $0xc8] sm:$0xff] %vm841, %v796
        %868 = vst.msk [vmem:[#allocation3 + $0xd0] sm:$0xff] %vm841, %v798
        %869 = vst.msk [vmem:[#allocation3 + $0xd8] sm:$0xff] %vm841, %v800
        %870 = vst.msk [vmem:[#allocation3 + $0xe0] sm:$0xff] %vm841, %v802
        %871 = vst.msk [vmem:[#allocation3 + $0xe8] sm:$0xff] %vm841, %v804
        %872 = vst.msk [vmem:[#allocation3 + $0xf0] sm:$0xff] %vm841, %v806
        %873 = vst.msk [vmem:[#allocation3 + $0xf8] sm:$0xff] %vm841, %v808
        %876 = vrot.lane.b32.xlu0 %v323, 12
        %v877 = vpop.permute.xlu0 %876
        %878 = vrot.lane.b32.xlu0 %v324, 12
        %v879 = vpop.permute.xlu0 %878
        %880 = vrot.lane.b32.xlu0 %v326, 12
        %v881 = vpop.permute.xlu0 %880
        %882 = vrot.lane.b32.xlu0 %v327, 12
        %v883 = vpop.permute.xlu0 %882
        %884 = vrot.lane.b32.xlu0 %v329, 12
        %v885 = vpop.permute.xlu0 %884
        %886 = vrot.lane.b32.xlu0 %v330, 12
        %v887 = vpop.permute.xlu0 %886
        %888 = vrot.lane.b32.xlu0 %v332, 12
        %v889 = vpop.permute.xlu0 %888
        %890 = vrot.lane.b32.xlu0 %v333, 12
        %v891 = vpop.permute.xlu0 %890
        %892 = vrot.lane.b32.xlu0 %v335, 12
        %v893 = vpop.permute.xlu0 %892
        %894 = vrot.lane.b32.xlu0 %v336, 12
        %v895 = vpop.permute.xlu0 %894
        %896 = vrot.lane.b32.xlu0 %v338, 12
        %v897 = vpop.permute.xlu0 %896
        %898 = vrot.lane.b32.xlu0 %v339, 12
        %v899 = vpop.permute.xlu0 %898
        %900 = vrot.lane.b32.xlu0 %v341, 12
        %v901 = vpop.permute.xlu0 %900
        %902 = vrot.lane.b32.xlu0 %v342, 12
        %v903 = vpop.permute.xlu0 %902
        %904 = vrot.lane.b32.xlu0 %v344, 12
        %v905 = vpop.permute.xlu0 %904
        %906 = vrot.lane.b32.xlu0 %v345, 12
        %v907 = vpop.permute.xlu0 %906
        %908 = vrot.lane.b32.xlu0 %v347, 12
        %v909 = vpop.permute.xlu0 %908
        %910 = vrot.lane.b32.xlu0 %v348, 12
        %v911 = vpop.permute.xlu0 %910
        %912 = vrot.lane.b32.xlu0 %v350, 12
        %v913 = vpop.permute.xlu0 %912
        %914 = vrot.lane.b32.xlu0 %v351, 12
        %v915 = vpop.permute.xlu0 %914
        %916 = vrot.lane.b32.xlu0 %v353, 12
        %v917 = vpop.permute.xlu0 %916
        %918 = vrot.lane.b32.xlu0 %v354, 12
        %v919 = vpop.permute.xlu0 %918
        %920 = vrot.lane.b32.xlu0 %v356, 12
        %v921 = vpop.permute.xlu0 %920
        %922 = vrot.lane.b32.xlu0 %v357, 12
        %v923 = vpop.permute.xlu0 %922
        %924 = vrot.lane.b32.xlu0 %v359, 12
        %v925 = vpop.permute.xlu0 %924
        %926 = vrot.lane.b32.xlu0 %v360, 12
        %v927 = vpop.permute.xlu0 %926
        %928 = vrot.lane.b32.xlu0 %v362, 12
        %v929 = vpop.permute.xlu0 %928
        %930 = vrot.lane.b32.xlu0 %v363, 12
        %v931 = vpop.permute.xlu0 %930
        %932 = vrot.lane.b32.xlu0 %v365, 12
        %v933 = vpop.permute.xlu0 %932
        %934 = vrot.lane.b32.xlu0 %v366, 12
        %v935 = vpop.permute.xlu0 %934
        %936 = vrot.lane.b32.xlu0 %v368, 12
        %v937 = vpop.permute.xlu0 %936
        %938 = vrot.lane.b32.xlu0 %v369, 12
        %v939 = vpop.permute.xlu0 %938
        %vm972 = vcmask 130144
        %973 = vst.msk [vmem:[#allocation3] sm:$0xff] %vm972, %v877
        %974 = vst.msk [vmem:[#allocation3 + $0x8] sm:$0xff] %vm972, %v879
        %975 = vst.msk [vmem:[#allocation3 + $0x10] sm:$0xff] %vm972, %v881
        %976 = vst.msk [vmem:[#allocation3 + $0x18] sm:$0xff] %vm972, %v883
        %977 = vst.msk [vmem:[#allocation3 + $0x20] sm:$0xff] %vm972, %v885
        %978 = vst.msk [vmem:[#allocation3 + $0x28] sm:$0xff] %vm972, %v887
        %979 = vst.msk [vmem:[#allocation3 + $0x30] sm:$0xff] %vm972, %v889
        %980 = vst.msk [vmem:[#allocation3 + $0x38] sm:$0xff] %vm972, %v891
        %981 = vst.msk [vmem:[#allocation3 + $0x40] sm:$0xff] %vm972, %v893
        %982 = vst.msk [vmem:[#allocation3 + $0x48] sm:$0xff] %vm972, %v895
        %983 = vst.msk [vmem:[#allocation3 + $0x50] sm:$0xff] %vm972, %v897
        %984 = vst.msk [vmem:[#allocation3 + $0x58] sm:$0xff] %vm972, %v899
        %985 = vst.msk [vmem:[#allocation3 + $0x60] sm:$0xff] %vm972, %v901
        %986 = vst.msk [vmem:[#allocation3 + $0x68] sm:$0xff] %vm972, %v903
        %987 = vst.msk [vmem:[#allocation3 + $0x70] sm:$0xff] %vm972, %v905
        %988 = vst.msk [vmem:[#allocation3 + $0x78] sm:$0xff] %vm972, %v907
        %989 = vst.msk [vmem:[#allocation3 + $0x80] sm:$0xff] %vm972, %v909
        %990 = vst.msk [vmem:[#allocation3 + $0x88] sm:$0xff] %vm972, %v911
        %991 = vst.msk [vmem:[#allocation3 + $0x90] sm:$0xff] %vm972, %v913
        %992 = vst.msk [vmem:[#allocation3 + $0x98] sm:$0xff] %vm972, %v915
        %993 = vst.msk [vmem:[#allocation3 + $0xa0] sm:$0xff] %vm972, %v917
        %994 = vst.msk [vmem:[#allocation3 + $0xa8] sm:$0xff] %vm972, %v919
        %995 = vst.msk [vmem:[#allocation3 + $0xb0] sm:$0xff] %vm972, %v921
        %996 = vst.msk [vmem:[#allocation3 + $0xb8] sm:$0xff] %vm972, %v923
        %997 = vst.msk [vmem:[#allocation3 + $0xc0] sm:$0xff] %vm972, %v925
        %998 = vst.msk [vmem:[#allocation3 + $0xc8] sm:$0xff] %vm972, %v927
        %999 = vst.msk [vmem:[#allocation3 + $0xd0] sm:$0xff] %vm972, %v929
        %1000 = vst.msk [vmem:[#allocation3 + $0xd8] sm:$0xff] %vm972, %v931
        %1001 = vst.msk [vmem:[#allocation3 + $0xe0] sm:$0xff] %vm972, %v933
        %1002 = vst.msk [vmem:[#allocation3 + $0xe8] sm:$0xff] %vm972, %v935
        %1003 = vst.msk [vmem:[#allocation3 + $0xf0] sm:$0xff] %vm972, %v937
        %1004 = vst.msk [vmem:[#allocation3 + $0xf8] sm:$0xff] %vm972, %v939
        %v1006 = vrot.slane %v368, 1
        %v1007 = vrot.slane %v369, 1
        %v1008 = vsel %vm454, %v1006, %v1007
        %v1009 = vrot.slane %v370, 1
        %v1010 = vsel %vm454, %v1007, %v1009
        %1011 = vrot.lane.b32.xlu0 %v462, 16
        %v1012 = vpop.permute.xlu0 %1011
        %1013 = vrot.lane.b32.xlu0 %v464, 16
        %v1014 = vpop.permute.xlu0 %1013
        %1015 = vrot.lane.b32.xlu0 %v467, 16
        %v1016 = vpop.permute.xlu0 %1015
        %1017 = vrot.lane.b32.xlu0 %v469, 16
        %v1018 = vpop.permute.xlu0 %1017
        %1019 = vrot.lane.b32.xlu0 %v472, 16
        %v1020 = vpop.permute.xlu0 %1019
        %1021 = vrot.lane.b32.xlu0 %v474, 16
        %v1022 = vpop.permute.xlu0 %1021
        %1023 = vrot.lane.b32.xlu0 %v477, 16
        %v1024 = vpop.permute.xlu0 %1023
        %1025 = vrot.lane.b32.xlu0 %v479, 16
        %v1026 = vpop.permute.xlu0 %1025
        %1027 = vrot.lane.b32.xlu0 %v482, 16
        %v1028 = vpop.permute.xlu0 %1027
        %1029 = vrot.lane.b32.xlu0 %v484, 16
        %v1030 = vpop.permute.xlu0 %1029
        %1031 = vrot.lane.b32.xlu0 %v487, 16
        %v1032 = vpop.permute.xlu0 %1031
        %1033 = vrot.lane.b32.xlu0 %v489, 16
        %v1034 = vpop.permute.xlu0 %1033
        %1035 = vrot.lane.b32.xlu0 %v492, 16
        %v1036 = vpop.permute.xlu0 %1035
        %1037 = vrot.lane.b32.xlu0 %v494, 16
        %v1038 = vpop.permute.xlu0 %1037
        %1039 = vrot.lane.b32.xlu0 %v497, 16
        %v1040 = vpop.permute.xlu0 %1039
        %1041 = vrot.lane.b32.xlu0 %v499, 16
        %v1042 = vpop.permute.xlu0 %1041
        %1043 = vrot.lane.b32.xlu0 %v502, 16
        %v1044 = vpop.permute.xlu0 %1043
        %1045 = vrot.lane.b32.xlu0 %v504, 16
        %v1046 = vpop.permute.xlu0 %1045
        %1047 = vrot.lane.b32.xlu0 %v507, 16
        %v1048 = vpop.permute.xlu0 %1047
        %1049 = vrot.lane.b32.xlu0 %v509, 16
        %v1050 = vpop.permute.xlu0 %1049
        %1051 = vrot.lane.b32.xlu0 %v512, 16
        %v1052 = vpop.permute.xlu0 %1051
        %1053 = vrot.lane.b32.xlu0 %v514, 16
        %v1054 = vpop.permute.xlu0 %1053
        %1055 = vrot.lane.b32.xlu0 %v517, 16
        %v1056 = vpop.permute.xlu0 %1055
        %1057 = vrot.lane.b32.xlu0 %v519, 16
        %v1058 = vpop.permute.xlu0 %1057
        %1059 = vrot.lane.b32.xlu0 %v522, 16
        %v1060 = vpop.permute.xlu0 %1059
        %1061 = vrot.lane.b32.xlu0 %v524, 16
        %v1062 = vpop.permute.xlu0 %1061
        %1063 = vrot.lane.b32.xlu0 %v527, 16
        %v1064 = vpop.permute.xlu0 %1063
        %1065 = vrot.lane.b32.xlu0 %v529, 16
        %v1066 = vpop.permute.xlu0 %1065
        %1067 = vrot.lane.b32.xlu0 %v532, 16
        %v1068 = vpop.permute.xlu0 %1067
        %1069 = vrot.lane.b32.xlu0 %v534, 16
        %v1070 = vpop.permute.xlu0 %1069
        %1071 = vrot.lane.b32.xlu0 %v1008, 16
        %v1072 = vpop.permute.xlu0 %1071
        %1073 = vrot.lane.b32.xlu0 %v1010, 16
        %v1074 = vpop.permute.xlu0 %1073
        %vm1107 = vcmask 162944
        %1108 = vst.msk [vmem:[#allocation3] sm:$0xff] %vm1107, %v1012
        %1109 = vst.msk [vmem:[#allocation3 + $0x8] sm:$0xff] %vm1107, %v1014
        %1110 = vst.msk [vmem:[#allocation3 + $0x10] sm:$0xff] %vm1107, %v1016
        %1111 = vst.msk [vmem:[#allocation3 + $0x18] sm:$0xff] %vm1107, %v1018
        %1112 = vst.msk [vmem:[#allocation3 + $0x20] sm:$0xff] %vm1107, %v1020
        %1113 = vst.msk [vmem:[#allocation3 + $0x28] sm:$0xff] %vm1107, %v1022
        %1114 = vst.msk [vmem:[#allocation3 + $0x30] sm:$0xff] %vm1107, %v1024
        %1115 = vst.msk [vmem:[#allocation3 + $0x38] sm:$0xff] %vm1107, %v1026
        %1116 = vst.msk [vmem:[#allocation3 + $0x40] sm:$0xff] %vm1107, %v1028
        %1117 = vst.msk [vmem:[#allocation3 + $0x48] sm:$0xff] %vm1107, %v1030
        %1118 = vst.msk [vmem:[#allocation3 + $0x50] sm:$0xff] %vm1107, %v1032
        %1119 = vst.msk [vmem:[#allocation3 + $0x58] sm:$0xff] %vm1107, %v1034
        %1120 = vst.msk [vmem:[#allocation3 + $0x60] sm:$0xff] %vm1107, %v1036
        %1121 = vst.msk [vmem:[#allocation3 + $0x68] sm:$0xff] %vm1107, %v1038
        %1122 = vst.msk [vmem:[#allocation3 + $0x70] sm:$0xff] %vm1107, %v1040
        %1123 = vst.msk [vmem:[#allocation3 + $0x78] sm:$0xff] %vm1107, %v1042
        %1124 = vst.msk [vmem:[#allocation3 + $0x80] sm:$0xff] %vm1107, %v1044
        %1125 = vst.msk [vmem:[#allocation3 + $0x88] sm:$0xff] %vm1107, %v1046
        %1126 = vst.msk [vmem:[#allocation3 + $0x90] sm:$0xff] %vm1107, %v1048
        %1127 = vst.msk [vmem:[#allocation3 + $0x98] sm:$0xff] %vm1107, %v1050
        %1128 = vst.msk [vmem:[#allocation3 + $0xa0] sm:$0xff] %vm1107, %v1052
        %1129 = vst.msk [vmem:[#allocation3 + $0xa8] sm:$0xff] %vm1107, %v1054
        %1130 = vst.msk [vmem:[#allocation3 + $0xb0] sm:$0xff] %vm1107, %v1056
        %1131 = vst.msk [vmem:[#allocation3 + $0xb8] sm:$0xff] %vm1107, %v1058
        %1132 = vst.msk [vmem:[#allocation3 + $0xc0] sm:$0xff] %vm1107, %v1060
        %1133 = vst.msk [vmem:[#allocation3 + $0xc8] sm:$0xff] %vm1107, %v1062
        %1134 = vst.msk [vmem:[#allocation3 + $0xd0] sm:$0xff] %vm1107, %v1064
        %1135 = vst.msk [vmem:[#allocation3 + $0xd8] sm:$0xff] %vm1107, %v1066
        %1136 = vst.msk [vmem:[#allocation3 + $0xe0] sm:$0xff] %vm1107, %v1068
        %1137 = vst.msk [vmem:[#allocation3 + $0xe8] sm:$0xff] %vm1107, %v1070
        %1138 = vst.msk [vmem:[#allocation3 + $0xf0] sm:$0xff] %vm1107, %v1072
        %1139 = vst.msk [vmem:[#allocation3 + $0xf8] sm:$0xff] %vm1107, %v1074
        %v1140 = vrot.slane %v368, 2
        %v1141 = vrot.slane %v369, 2
        %v1142 = vsel %vm664, %v1140, %v1141
        %v1143 = vrot.slane %v370, 2
        %v1144 = vsel %vm664, %v1141, %v1143
        %1145 = vrot.lane.b32.xlu0 %v672, 20
        %v1146 = vpop.permute.xlu0 %1145
        %1147 = vrot.lane.b32.xlu0 %v674, 20
        %v1148 = vpop.permute.xlu0 %1147
        %1149 = vrot.lane.b32.xlu0 %v677, 20
        %v1150 = vpop.permute.xlu0 %1149
        %1151 = vrot.lane.b32.xlu0 %v679, 20
        %v1152 = vpop.permute.xlu0 %1151
        %1153 = vrot.lane.b32.xlu0 %v682, 20
        %v1154 = vpop.permute.xlu0 %1153
        %1155 = vrot.lane.b32.xlu0 %v684, 20
        %v1156 = vpop.permute.xlu0 %1155
        %1157 = vrot.lane.b32.xlu0 %v687, 20
        %v1158 = vpop.permute.xlu0 %1157
        %1159 = vrot.lane.b32.xlu0 %v689, 20
        %v1160 = vpop.permute.xlu0 %1159
        %1161 = vrot.lane.b32.xlu0 %v692, 20
        %v1162 = vpop.permute.xlu0 %1161
        %1163 = vrot.lane.b32.xlu0 %v694, 20
        %v1164 = vpop.permute.xlu0 %1163
        %1165 = vrot.lane.b32.xlu0 %v697, 20
        %v1166 = vpop.permute.xlu0 %1165
        %1167 = vrot.lane.b32.xlu0 %v699, 20
        %v1168 = vpop.permute.xlu0 %1167
        %1169 = vrot.lane.b32.xlu0 %v702, 20
        %v1170 = vpop.permute.xlu0 %1169
        %1171 = vrot.lane.b32.xlu0 %v704, 20
        %v1172 = vpop.permute.xlu0 %1171
        %1173 = vrot.lane.b32.xlu0 %v707, 20
        %v1174 = vpop.permute.xlu0 %1173
        %1175 = vrot.lane.b32.xlu0 %v709, 20
        %v1176 = vpop.permute.xlu0 %1175
        %1177 = vrot.lane.b32.xlu0 %v712, 20
        %v1178 = vpop.permute.xlu0 %1177
        %1179 = vrot.lane.b32.xlu0 %v714, 20
        %v1180 = vpop.permute.xlu0 %1179
        %1181 = vrot.lane.b32.xlu0 %v717, 20
        %v1182 = vpop.permute.xlu0 %1181
        %1183 = vrot.lane.b32.xlu0 %v719, 20
        %v1184 = vpop.permute.xlu0 %1183
        %1185 = vrot.lane.b32.xlu0 %v722, 20
        %v1186 = vpop.permute.xlu0 %1185
        %1187 = vrot.lane.b32.xlu0 %v724, 20
        %v1188 = vpop.permute.xlu0 %1187
        %1189 = vrot.lane.b32.xlu0 %v727, 20
        %v1190 = vpop.permute.xlu0 %1189
        %1191 = vrot.lane.b32.xlu0 %v729, 20
        %v1192 = vpop.permute.xlu0 %1191
        %1193 = vrot.lane.b32.xlu0 %v732, 20
        %v1194 = vpop.permute.xlu0 %1193
        %1195 = vrot.lane.b32.xlu0 %v734, 20
        %v1196 = vpop.permute.xlu0 %1195
        %1197 = vrot.lane.b32.xlu0 %v737, 20
        %v1198 = vpop.permute.xlu0 %1197
        %1199 = vrot.lane.b32.xlu0 %v739, 20
        %v1200 = vpop.permute.xlu0 %1199
        %1201 = vrot.lane.b32.xlu0 %v742, 20
        %v1202 = vpop.permute.xlu0 %1201
        %1203 = vrot.lane.b32.xlu0 %v744, 20
        %v1204 = vpop.permute.xlu0 %1203
        %1205 = vrot.lane.b32.xlu0 %v1142, 20
        %v1206 = vpop.permute.xlu0 %1205
        %1207 = vrot.lane.b32.xlu0 %v1144, 20
        %v1208 = vpop.permute.xlu0 %1207
        %vm1241 = vcmask 195744
        %1242 = vst.msk [vmem:[#allocation3] sm:$0xff] %vm1241, %v1146
        %1243 = vst.msk [vmem:[#allocation3 + $0x8] sm:$0xff] %vm1241, %v1148
        %1244 = vst.msk [vmem:[#allocation3 + $0x10] sm:$0xff] %vm1241, %v1150
        %1245 = vst.msk [vmem:[#allocation3 + $0x18] sm:$0xff] %vm1241, %v1152
        %1246 = vst.msk [vmem:[#allocation3 + $0x20] sm:$0xff] %vm1241, %v1154
        %1247 = vst.msk [vmem:[#allocation3 + $0x28] sm:$0xff] %vm1241, %v1156
        %1248 = vst.msk [vmem:[#allocation3 + $0x30] sm:$0xff] %vm1241, %v1158
        %1249 = vst.msk [vmem:[#allocation3 + $0x38] sm:$0xff] %vm1241, %v1160
        %1250 = vst.msk [vmem:[#allocation3 + $0x40] sm:$0xff] %vm1241, %v1162
        %1251 = vst.msk [vmem:[#allocation3 + $0x48] sm:$0xff] %vm1241, %v1164
        %1252 = vst.msk [vmem:[#allocation3 + $0x50] sm:$0xff] %vm1241, %v1166
        %1253 = vst.msk [vmem:[#allocation3 + $0x58] sm:$0xff] %vm1241, %v1168
        %1254 = vst.msk [vmem:[#allocation3 + $0x60] sm:$0xff] %vm1241, %v1170
        %1255 = vst.msk [vmem:[#allocation3 + $0x68] sm:$0xff] %vm1241, %v1172
        %1256 = vst.msk [vmem:[#allocation3 + $0x70] sm:$0xff] %vm1241, %v1174
        %1257 = vst.msk [vmem:[#allocation3 + $0x78] sm:$0xff] %vm1241, %v1176
        %1258 = vst.msk [vmem:[#allocation3 + $0x80] sm:$0xff] %vm1241, %v1178
        %1259 = vst.msk [vmem:[#allocation3 + $0x88] sm:$0xff] %vm1241, %v1180
        %1260 = vst.msk [vmem:[#allocation3 + $0x90] sm:$0xff] %vm1241, %v1182
        %1261 = vst.msk [vmem:[#allocation3 + $0x98] sm:$0xff] %vm1241, %v1184
        %1262 = vst.msk [vmem:[#allocation3 + $0xa0] sm:$0xff] %vm1241, %v1186
        %1263 = vst.msk [vmem:[#allocation3 + $0xa8] sm:$0xff] %vm1241, %v1188
        %1264 = vst.msk [vmem:[#allocation3 + $0xb0] sm:$0xff] %vm1241, %v1190
        %1265 = vst.msk [vmem:[#allocation3 + $0xb8] sm:$0xff] %vm1241, %v1192
        %1266 = vst.msk [vmem:[#allocation3 + $0xc0] sm:$0xff] %vm1241, %v1194
        %1267 = vst.msk [vmem:[#allocation3 + $0xc8] sm:$0xff] %vm1241, %v1196
        %1268 = vst.msk [vmem:[#allocation3 + $0xd0] sm:$0xff] %vm1241, %v1198
        %1269 = vst.msk [vmem:[#allocation3 + $0xd8] sm:$0xff] %vm1241, %v1200
        %1270 = vst.msk [vmem:[#allocation3 + $0xe0] sm:$0xff] %vm1241, %v1202
        %1271 = vst.msk [vmem:[#allocation3 + $0xe8] sm:$0xff] %vm1241, %v1204
        %1272 = vst.msk [vmem:[#allocation3 + $0xf0] sm:$0xff] %vm1241, %v1206
        %1273 = vst.msk [vmem:[#allocation3 + $0xf8] sm:$0xff] %vm1241, %v1208
        %1276 = vrot.lane.b32.xlu0 %v326, 24
        %v1277 = vpop.permute.xlu0 %1276
        %1278 = vrot.lane.b32.xlu0 %v327, 24
        %v1279 = vpop.permute.xlu0 %1278
        %1280 = vrot.lane.b32.xlu0 %v329, 24
        %v1281 = vpop.permute.xlu0 %1280
        %1282 = vrot.lane.b32.xlu0 %v330, 24
        %v1283 = vpop.permute.xlu0 %1282
        %1284 = vrot.lane.b32.xlu0 %v332, 24
        %v1285 = vpop.permute.xlu0 %1284
        %1286 = vrot.lane.b32.xlu0 %v333, 24
        %v1287 = vpop.permute.xlu0 %1286
        %1288 = vrot.lane.b32.xlu0 %v335, 24
        %v1289 = vpop.permute.xlu0 %1288
        %1290 = vrot.lane.b32.xlu0 %v336, 24
        %v1291 = vpop.permute.xlu0 %1290
        %1292 = vrot.lane.b32.xlu0 %v338, 24
        %v1293 = vpop.permute.xlu0 %1292
        %1294 = vrot.lane.b32.xlu0 %v339, 24
        %v1295 = vpop.permute.xlu0 %1294
        %1296 = vrot.lane.b32.xlu0 %v341, 24
        %v1297 = vpop.permute.xlu0 %1296
        %1298 = vrot.lane.b32.xlu0 %v342, 24
        %v1299 = vpop.permute.xlu0 %1298
        %1300 = vrot.lane.b32.xlu0 %v344, 24
        %v1301 = vpop.permute.xlu0 %1300
        %1302 = vrot.lane.b32.xlu0 %v345, 24
        %v1303 = vpop.permute.xlu0 %1302
        %1304 = vrot.lane.b32.xlu0 %v347, 24
        %v1305 = vpop.permute.xlu0 %1304
        %1306 = vrot.lane.b32.xlu0 %v348, 24
        %v1307 = vpop.permute.xlu0 %1306
        %1308 = vrot.lane.b32.xlu0 %v350, 24
        %v1309 = vpop.permute.xlu0 %1308
        %1310 = vrot.lane.b32.xlu0 %v351, 24
        %v1311 = vpop.permute.xlu0 %1310
        %1312 = vrot.lane.b32.xlu0 %v353, 24
        %v1313 = vpop.permute.xlu0 %1312
        %1314 = vrot.lane.b32.xlu0 %v354, 24
        %v1315 = vpop.permute.xlu0 %1314
        %1316 = vrot.lane.b32.xlu0 %v356, 24
        %v1317 = vpop.permute.xlu0 %1316
        %1318 = vrot.lane.b32.xlu0 %v357, 24
        %v1319 = vpop.permute.xlu0 %1318
        %1320 = vrot.lane.b32.xlu0 %v359, 24
        %v1321 = vpop.permute.xlu0 %1320
        %1322 = vrot.lane.b32.xlu0 %v360, 24
        %v1323 = vpop.permute.xlu0 %1322
        %1324 = vrot.lane.b32.xlu0 %v362, 24
        %v1325 = vpop.permute.xlu0 %1324
        %1326 = vrot.lane.b32.xlu0 %v363, 24
        %v1327 = vpop.permute.xlu0 %1326
        %1328 = vrot.lane.b32.xlu0 %v365, 24
        %v1329 = vpop.permute.xlu0 %1328
        %1330 = vrot.lane.b32.xlu0 %v366, 24
        %v1331 = vpop.permute.xlu0 %1330
        %1332 = vrot.lane.b32.xlu0 %v368, 24
        %v1333 = vpop.permute.xlu0 %1332
        %1334 = vrot.lane.b32.xlu0 %v369, 24
        %v1335 = vpop.permute.xlu0 %1334
        %1336 = vrot.lane.b32.xlu0 %v371, 24
        %v1337 = vpop.permute.xlu0 %1336
        %1338 = vrot.lane.b32.xlu0 %v372, 24
        %v1339 = vpop.permute.xlu0 %1338
        %vm1372 = vcmask 228544
        %1373 = vst.msk [vmem:[#allocation3] sm:$0xff] %vm1372, %v1277
        %1374 = vst.msk [vmem:[#allocation3 + $0x8] sm:$0xff] %vm1372, %v1279
        %1375 = vst.msk [vmem:[#allocation3 + $0x10] sm:$0xff] %vm1372, %v1281
        %1376 = vst.msk [vmem:[#allocation3 + $0x18] sm:$0xff] %vm1372, %v1283
        %1377 = vst.msk [vmem:[#allocation3 + $0x20] sm:$0xff] %vm1372, %v1285
        %1378 = vst.msk [vmem:[#allocation3 + $0x28] sm:$0xff] %vm1372, %v1287
        %1379 = vst.msk [vmem:[#allocation3 + $0x30] sm:$0xff] %vm1372, %v1289
        %1380 = vst.msk [vmem:[#allocation3 + $0x38] sm:$0xff] %vm1372, %v1291
        %1381 = vst.msk [vmem:[#allocation3 + $0x40] sm:$0xff] %vm1372, %v1293
        %1382 = vst.msk [vmem:[#allocation3 + $0x48] sm:$0xff] %vm1372, %v1295
        %1383 = vst.msk [vmem:[#allocation3 + $0x50] sm:$0xff] %vm1372, %v1297
        %1384 = vst.msk [vmem:[#allocation3 + $0x58] sm:$0xff] %vm1372, %v1299
        %1385 = vst.msk [vmem:[#allocation3 + $0x60] sm:$0xff] %vm1372, %v1301
        %1386 = vst.msk [vmem:[#allocation3 + $0x68] sm:$0xff] %vm1372, %v1303
        %1387 = vst.msk [vmem:[#allocation3 + $0x70] sm:$0xff] %vm1372, %v1305
        %1388 = vst.msk [vmem:[#allocation3 + $0x78] sm:$0xff] %vm1372, %v1307
        %1389 = vst.msk [vmem:[#allocation3 + $0x80] sm:$0xff] %vm1372, %v1309
        %1390 = vst.msk [vmem:[#allocation3 + $0x88] sm:$0xff] %vm1372, %v1311
        %1391 = vst.msk [vmem:[#allocation3 + $0x90] sm:$0xff] %vm1372, %v1313
        %1392 = vst.msk [vmem:[#allocation3 + $0x98] sm:$0xff] %vm1372, %v1315
        %1393 = vst.msk [vmem:[#allocation3 + $0xa0] sm:$0xff] %vm1372, %v1317
        %1394 = vst.msk [vmem:[#allocation3 + $0xa8] sm:$0xff] %vm1372, %v1319
        %1395 = vst.msk [vmem:[#allocation3 + $0xb0] sm:$0xff] %vm1372, %v1321
        %1396 = vst.msk [vmem:[#allocation3 + $0xb8] sm:$0xff] %vm1372, %v1323
        %1397 = vst.msk [vmem:[#allocation3 + $0xc0] sm:$0xff] %vm1372, %v1325
        %1398 = vst.msk [vmem:[#allocation3 + $0xc8] sm:$0xff] %vm1372, %v1327
        %1399 = vst.msk [vmem:[#allocation3 + $0xd0] sm:$0xff] %vm1372, %v1329
        %1400 = vst.msk [vmem:[#allocation3 + $0xd8] sm:$0xff] %vm1372, %v1331
        %1401 = vst.msk [vmem:[#allocation3 + $0xe0] sm:$0xff] %vm1372, %v1333
        %1402 = vst.msk [vmem:[#allocation3 + $0xe8] sm:$0xff] %vm1372, %v1335
        %1403 = vst.msk [vmem:[#allocation3 + $0xf0] sm:$0xff] %vm1372, %v1337
        %1404 = vst.msk [vmem:[#allocation3 + $0xf8] sm:$0xff] %vm1372, %v1339
        %v1406 = vrot.slane %v371, 1
        %v1407 = vrot.slane %v372, 1
        %v1408 = vsel %vm454, %v1406, %v1407
        %v1409 = vrot.slane %v373, 1
        %v1410 = vsel %vm454, %v1407, %v1409
        %1411 = vrot.lane.b32.xlu0 %v467, 28
        %v1412 = vpop.permute.xlu0 %1411
        %1413 = vrot.lane.b32.xlu0 %v469, 28
        %v1414 = vpop.permute.xlu0 %1413
        %1415 = vrot.lane.b32.xlu0 %v472, 28
        %v1416 = vpop.permute.xlu0 %1415
        %1417 = vrot.lane.b32.xlu0 %v474, 28
        %v1418 = vpop.permute.xlu0 %1417
        %1419 = vrot.lane.b32.xlu0 %v477, 28
        %v1420 = vpop.permute.xlu0 %1419
        %1421 = vrot.lane.b32.xlu0 %v479, 28
        %v1422 = vpop.permute.xlu0 %1421
        %1423 = vrot.lane.b32.xlu0 %v482, 28
        %v1424 = vpop.permute.xlu0 %1423
        %1425 = vrot.lane.b32.xlu0 %v484, 28
        %v1426 = vpop.permute.xlu0 %1425
        %1427 = vrot.lane.b32.xlu0 %v487, 28
        %v1428 = vpop.permute.xlu0 %1427
        %1429 = vrot.lane.b32.xlu0 %v489, 28
        %v1430 = vpop.permute.xlu0 %1429
        %1431 = vrot.lane.b32.xlu0 %v492, 28
        %v1432 = vpop.permute.xlu0 %1431
        %1433 = vrot.lane.b32.xlu0 %v494, 28
        %v1434 = vpop.permute.xlu0 %1433
        %1435 = vrot.lane.b32.xlu0 %v497, 28
        %v1436 = vpop.permute.xlu0 %1435
        %1437 = vrot.lane.b32.xlu0 %v499, 28
        %v1438 = vpop.permute.xlu0 %1437
        %1439 = vrot.lane.b32.xlu0 %v502, 28
        %v1440 = vpop.permute.xlu0 %1439
        %1441 = vrot.lane.b32.xlu0 %v504, 28
        %v1442 = vpop.permute.xlu0 %1441
        %1443 = vrot.lane.b32.xlu0 %v507, 28
        %v1444 = vpop.permute.xlu0 %1443
        %1445 = vrot.lane.b32.xlu0 %v509, 28
        %v1446 = vpop.permute.xlu0 %1445
        %1447 = vrot.lane.b32.xlu0 %v512, 28
        %v1448 = vpop.permute.xlu0 %1447
        %1449 = vrot.lane.b32.xlu0 %v514, 28
        %v1450 = vpop.permute.xlu0 %1449
        %1451 = vrot.lane.b32.xlu0 %v517, 28
        %v1452 = vpop.permute.xlu0 %1451
        %1453 = vrot.lane.b32.xlu0 %v519, 28
        %v1454 = vpop.permute.xlu0 %1453
        %1455 = vrot.lane.b32.xlu0 %v522, 28
        %v1456 = vpop.permute.xlu0 %1455
        %1457 = vrot.lane.b32.xlu0 %v524, 28
        %v1458 = vpop.permute.xlu0 %1457
        %1459 = vrot.lane.b32.xlu0 %v527, 28
        %v1460 = vpop.permute.xlu0 %1459
        %1461 = vrot.lane.b32.xlu0 %v529, 28
        %v1462 = vpop.permute.xlu0 %1461
        %1463 = vrot.lane.b32.xlu0 %v532, 28
        %v1464 = vpop.permute.xlu0 %1463
        %1465 = vrot.lane.b32.xlu0 %v534, 28
        %v1466 = vpop.permute.xlu0 %1465
        %1467 = vrot.lane.b32.xlu0 %v1008, 28
        %v1468 = vpop.permute.xlu0 %1467
        %1469 = vrot.lane.b32.xlu0 %v1010, 28
        %v1470 = vpop.permute.xlu0 %1469
        %1471 = vrot.lane.b32.xlu0 %v1408, 28
        %v1472 = vpop.permute.xlu0 %1471
        %1473 = vrot.lane.b32.xlu0 %v1410, 28
        %v1474 = vpop.permute.xlu0 %1473
        %vm1507 = vcmask 261344
        %1508 = vst.msk [vmem:[#allocation3] sm:$0xff] %vm1507, %v1412
        %1509 = vst.msk [vmem:[#allocation3 + $0x8] sm:$0xff] %vm1507, %v1414
        %1510 = vst.msk [vmem:[#allocation3 + $0x10] sm:$0xff] %vm1507, %v1416
        %1511 = vst.msk [vmem:[#allocation3 + $0x18] sm:$0xff] %vm1507, %v1418
        %1512 = vst.msk [vmem:[#allocation3 + $0x20] sm:$0xff] %vm1507, %v1420
        %1513 = vst.msk [vmem:[#allocation3 + $0x28] sm:$0xff] %vm1507, %v1422
        %1514 = vst.msk [vmem:[#allocation3 + $0x30] sm:$0xff] %vm1507, %v1424
        %1515 = vst.msk [vmem:[#allocation3 + $0x38] sm:$0xff] %vm1507, %v1426
        %1516 = vst.msk [vmem:[#allocation3 + $0x40] sm:$0xff] %vm1507, %v1428
        %1517 = vst.msk [vmem:[#allocation3 + $0x48] sm:$0xff] %vm1507, %v1430
        %1518 = vst.msk [vmem:[#allocation3 + $0x50] sm:$0xff] %vm1507, %v1432
        %1519 = vst.msk [vmem:[#allocation3 + $0x58] sm:$0xff] %vm1507, %v1434
        %1520 = vst.msk [vmem:[#allocation3 + $0x60] sm:$0xff] %vm1507, %v1436
        %1521 = vst.msk [vmem:[#allocation3 + $0x68] sm:$0xff] %vm1507, %v1438
        %1522 = vst.msk [vmem:[#allocation3 + $0x70] sm:$0xff] %vm1507, %v1440
        %1523 = vst.msk [vmem:[#allocation3 + $0x78] sm:$0xff] %vm1507, %v1442
        %1524 = vst.msk [vmem:[#allocation3 + $0x80] sm:$0xff] %vm1507, %v1444
        %1525 = vst.msk [vmem:[#allocation3 + $0x88] sm:$0xff] %vm1507, %v1446
        %1526 = vst.msk [vmem:[#allocation3 + $0x90] sm:$0xff] %vm1507, %v1448
        %1527 = vst.msk [vmem:[#allocation3 + $0x98] sm:$0xff] %vm1507, %v1450
        %1528 = vst.msk [vmem:[#allocation3 + $0xa0] sm:$0xff] %vm1507, %v1452
        %1529 = vst.msk [vmem:[#allocation3 + $0xa8] sm:$0xff] %vm1507, %v1454
        %1530 = vst.msk [vmem:[#allocation3 + $0xb0] sm:$0xff] %vm1507, %v1456
        %1531 = vst.msk [vmem:[#allocation3 + $0xb8] sm:$0xff] %vm1507, %v1458
        %1532 = vst.msk [vmem:[#allocation3 + $0xc0] sm:$0xff] %vm1507, %v1460
        %1533 = vst.msk [vmem:[#allocation3 + $0xc8] sm:$0xff] %vm1507, %v1462
        %1534 = vst.msk [vmem:[#allocation3 + $0xd0] sm:$0xff] %vm1507, %v1464
        %1535 = vst.msk [vmem:[#allocation3 + $0xd8] sm:$0xff] %vm1507, %v1466
        %1536 = vst.msk [vmem:[#allocation3 + $0xe0] sm:$0xff] %vm1507, %v1468
        %1537 = vst.msk [vmem:[#allocation3 + $0xe8] sm:$0xff] %vm1507, %v1470
        %1538 = vst.msk [vmem:[#allocation3 + $0xf0] sm:$0xff] %vm1507, %v1472
        %1539 = vst.msk [vmem:[#allocation3 + $0xf8] sm:$0xff] %vm1507, %v1474
        %v1540 = vrot.slane %v371, 2
        %v1541 = vrot.slane %v372, 2
        %v1542 = vsel %vm664, %v1540, %v1541
        %v1543 = vrot.slane %v373, 2
        %v1544 = vsel %vm664, %v1541, %v1543
        %1545 = vrot.lane.b32.xlu0 %v677, 32
        %v1546 = vpop.permute.xlu0 %1545
        %1547 = vrot.lane.b32.xlu0 %v679, 32
        %v1548 = vpop.permute.xlu0 %1547
        %1549 = vrot.lane.b32.xlu0 %v682, 32
        %v1550 = vpop.permute.xlu0 %1549
        %1551 = vrot.lane.b32.xlu0 %v684, 32
        %v1552 = vpop.permute.xlu0 %1551
        %1553 = vrot.lane.b32.xlu0 %v687, 32
        %v1554 = vpop.permute.xlu0 %1553
        %1555 = vrot.lane.b32.xlu0 %v689, 32
        %v1556 = vpop.permute.xlu0 %1555
        %1557 = vrot.lane.b32.xlu0 %v692, 32
        %v1558 = vpop.permute.xlu0 %1557
        %1559 = vrot.lane.b32.xlu0 %v694, 32
        %v1560 = vpop.permute.xlu0 %1559
        %1561 = vrot.lane.b32.xlu0 %v697, 32
        %v1562 = vpop.permute.xlu0 %1561
        %1563 = vrot.lane.b32.xlu0 %v699, 32
        %v1564 = vpop.permute.xlu0 %1563
        %1565 = vrot.lane.b32.xlu0 %v702, 32
        %v1566 = vpop.permute.xlu0 %1565
        %1567 = vrot.lane.b32.xlu0 %v704, 32
        %v1568 = vpop.permute.xlu0 %1567
        %1569 = vrot.lane.b32.xlu0 %v707, 32
        %v1570 = vpop.permute.xlu0 %1569
        %1571 = vrot.lane.b32.xlu0 %v709, 32
        %v1572 = vpop.permute.xlu0 %1571
        %1573 = vrot.lane.b32.xlu0 %v712, 32
        %v1574 = vpop.permute.xlu0 %1573
        %1575 = vrot.lane.b32.xlu0 %v714, 32
        %v1576 = vpop.permute.xlu0 %1575
        %1577 = vrot.lane.b32.xlu0 %v717, 32
        %v1578 = vpop.permute.xlu0 %1577
        %1579 = vrot.lane.b32.xlu0 %v719, 32
        %v1580 = vpop.permute.xlu0 %1579
        %1581 = vrot.lane.b32.xlu0 %v722, 32
        %v1582 = vpop.permute.xlu0 %1581
        %1583 = vrot.lane.b32.xlu0 %v724, 32
        %v1584 = vpop.permute.xlu0 %1583
        %1585 = vrot.lane.b32.xlu0 %v727, 32
        %v1586 = vpop.permute.xlu0 %1585
        %1587 = vrot.lane.b32.xlu0 %v729, 32
        %v1588 = vpop.permute.xlu0 %1587
        %1589 = vrot.lane.b32.xlu0 %v732, 32
        %v1590 = vpop.permute.xlu0 %1589
        %1591 = vrot.lane.b32.xlu0 %v734, 32
        %v1592 = vpop.permute.xlu0 %1591
        %1593 = vrot.lane.b32.xlu0 %v737, 32
        %v1594 = vpop.permute.xlu0 %1593
        %1595 = vrot.lane.b32.xlu0 %v739, 32
        %v1596 = vpop.permute.xlu0 %1595
        %1597 = vrot.lane.b32.xlu0 %v742, 32
        %v1598 = vpop.permute.xlu0 %1597
        %1599 = vrot.lane.b32.xlu0 %v744, 32
        %v1600 = vpop.permute.xlu0 %1599
        %1601 = vrot.lane.b32.xlu0 %v1142, 32
        %v1602 = vpop.permute.xlu0 %1601
        %1603 = vrot.lane.b32.xlu0 %v1144, 32
        %v1604 = vpop.permute.xlu0 %1603
        %1605 = vrot.lane.b32.xlu0 %v1542, 32
        %v1606 = vpop.permute.xlu0 %1605
        %1607 = vrot.lane.b32.xlu0 %v1544, 32
        %v1608 = vpop.permute.xlu0 %1607
        %vm1641 = vcmask 294144
        %1642 = vst.msk [vmem:[#allocation3] sm:$0xff] %vm1641, %v1546
        %1643 = vst.msk [vmem:[#allocation3 + $0x8] sm:$0xff] %vm1641, %v1548
        %1644 = vst.msk [vmem:[#allocation3 + $0x10] sm:$0xff] %vm1641, %v1550
        %1645 = vst.msk [vmem:[#allocation3 + $0x18] sm:$0xff] %vm1641, %v1552
        %1646 = vst.msk [vmem:[#allocation3 + $0x20] sm:$0xff] %vm1641, %v1554
        %1647 = vst.msk [vmem:[#allocation3 + $0x28] sm:$0xff] %vm1641, %v1556
        %1648 = vst.msk [vmem:[#allocation3 + $0x30] sm:$0xff] %vm1641, %v1558
        %1649 = vst.msk [vmem:[#allocation3 + $0x38] sm:$0xff] %vm1641, %v1560
        %1650 = vst.msk [vmem:[#allocation3 + $0x40] sm:$0xff] %vm1641, %v1562
        %1651 = vst.msk [vmem:[#allocation3 + $0x48] sm:$0xff] %vm1641, %v1564
        %1652 = vst.msk [vmem:[#allocation3 + $0x50] sm:$0xff] %vm1641, %v1566
        %1653 = vst.msk [vmem:[#allocation3 + $0x58] sm:$0xff] %vm1641, %v1568
        %1654 = vst.msk [vmem:[#allocation3 + $0x60] sm:$0xff] %vm1641, %v1570
        %1655 = vst.msk [vmem:[#allocation3 + $0x68] sm:$0xff] %vm1641, %v1572
        %1656 = vst.msk [vmem:[#allocation3 + $0x70] sm:$0xff] %vm1641, %v1574
        %1657 = vst.msk [vmem:[#allocation3 + $0x78] sm:$0xff] %vm1641, %v1576
        %1658 = vst.msk [vmem:[#allocation3 + $0x80] sm:$0xff] %vm1641, %v1578
        %1659 = vst.msk [vmem:[#allocation3 + $0x88] sm:$0xff] %vm1641, %v1580
        %1660 = vst.msk [vmem:[#allocation3 + $0x90] sm:$0xff] %vm1641, %v1582
        %1661 = vst.msk [vmem:[#allocation3 + $0x98] sm:$0xff] %vm1641, %v1584
        %1662 = vst.msk [vmem:[#allocation3 + $0xa0] sm:$0xff] %vm1641, %v1586
        %1663 = vst.msk [vmem:[#allocation3 + $0xa8] sm:$0xff] %vm1641, %v1588
        %1664 = vst.msk [vmem:[#allocation3 + $0xb0] sm:$0xff] %vm1641, %v1590
        %1665 = vst.msk [vmem:[#allocation3 + $0xb8] sm:$0xff] %vm1641, %v1592
        %1666 = vst.msk [vmem:[#allocation3 + $0xc0] sm:$0xff] %vm1641, %v1594
        %1667 = vst.msk [vmem:[#allocation3 + $0xc8] sm:$0xff] %vm1641, %v1596
        %1668 = vst.msk [vmem:[#allocation3 + $0xd0] sm:$0xff] %vm1641, %v1598
        %1669 = vst.msk [vmem:[#allocation3 + $0xd8] sm:$0xff] %vm1641, %v1600
        %1670 = vst.msk [vmem:[#allocation3 + $0xe0] sm:$0xff] %vm1641, %v1602
        %1671 = vst.msk [vmem:[#allocation3 + $0xe8] sm:$0xff] %vm1641, %v1604
        %1672 = vst.msk [vmem:[#allocation3 + $0xf0] sm:$0xff] %vm1641, %v1606
        %1673 = vst.msk [vmem:[#allocation3 + $0xf8] sm:$0xff] %vm1641, %v1608
        %v1674 = vld [vmem:[#allocation3] sm:$0xff]
        %v1675 = vld [vmem:[#allocation3 + $0x8] sm:$0xff]
        %v1676 = vld [vmem:[#allocation3 + $0x10] sm:$0xff]
        %v1677 = vld [vmem:[#allocation3 + $0x18] sm:$0xff]
        %v1678 = vld [vmem:[#allocation3 + $0x20] sm:$0xff]
        %v1679 = vld [vmem:[#allocation3 + $0x28] sm:$0xff]
        %v1680 = vld [vmem:[#allocation3 + $0x30] sm:$0xff]
        %v1681 = vld [vmem:[#allocation3 + $0x38] sm:$0xff]
        %v1682 = vld [vmem:[#allocation3 + $0x40] sm:$0xff]
        %v1683 = vld [vmem:[#allocation3 + $0x48] sm:$0xff]
        %v1684 = vld [vmem:[#allocation3 + $0x50] sm:$0xff]
        %v1685 = vld [vmem:[#allocation3 + $0x58] sm:$0xff]
        %v1686 = vld [vmem:[#allocation3 + $0x60] sm:$0xff]
        %v1687 = vld [vmem:[#allocation3 + $0x68] sm:$0xff]
        %v1688 = vld [vmem:[#allocation3 + $0x70] sm:$0xff]
        %v1689 = vld [vmem:[#allocation3 + $0x78] sm:$0xff]
        %v1690 = vld [vmem:[#allocation3 + $0x80] sm:$0xff]
        %v1691 = vld [vmem:[#allocation3 + $0x88] sm:$0xff]
        %v1692 = vld [vmem:[#allocation3 + $0x90] sm:$0xff]
        %v1693 = vld [vmem:[#allocation3 + $0x98] sm:$0xff]
        %v1694 = vld [vmem:[#allocation3 + $0xa0] sm:$0xff]
        %v1695 = vld [vmem:[#allocation3 + $0xa8] sm:$0xff]
        %v1696 = vld [vmem:[#allocation3 + $0xb0] sm:$0xff]
        %v1697 = vld [vmem:[#allocation3 + $0xb8] sm:$0xff]
        %v1698 = vld [vmem:[#allocation3 + $0xc0] sm:$0xff]
        %v1699 = vld [vmem:[#allocation3 + $0xc8] sm:$0xff]
        %v1700 = vld [vmem:[#allocation3 + $0xd0] sm:$0xff]
        %v1701 = vld [vmem:[#allocation3 + $0xd8] sm:$0xff]
        %v1702 = vld [vmem:[#allocation3 + $0xe0] sm:$0xff]
        %v1703 = vld [vmem:[#allocation3 + $0xe8] sm:$0xff]
        %v1704 = vld [vmem:[#allocation3 + $0xf0] sm:$0xff]
        %v1705 = vld [vmem:[#allocation3 + $0xf8] sm:$0xff]
        %v1706 = vld [vmem:[%s2] sm:$0xff]
        %v1707 = vld [vmem:[%s2 + $0x8] sm:$0xff]
        %v1708 = vld [vmem:[%s2 + $0x10] sm:$0xff]
        %v1709 = vld [vmem:[%s2 + $0x18] sm:$0xff]
        %v1710 = vld [vmem:[%s2 + $0x20] sm:$0xf]
        %vm1711 = vcmask 293888
        %v1713 = vsel %vm1711, %v1674, 0
        %v1716 = vsel %vm1711, %v1675, 0
        %v1719 = vsel %vm1711, %v1676, 0
        %v1722 = vsel %vm1711, %v1677, 0
        %v1725 = vsel %vm1711, %v1678, 0
        %v1728 = vsel %vm1711, %v1679, 0
        %v1731 = vsel %vm1711, %v1680, 0
        %v1734 = vsel %vm1711, %v1681, 0
        %v1737 = vsel %vm1711, %v1682, 0
        %v1740 = vsel %vm1711, %v1683, 0
        %v1743 = vsel %vm1711, %v1684, 0
        %v1746 = vsel %vm1711, %v1685, 0
        %v1749 = vsel %vm1711, %v1686, 0
        %v1752 = vsel %vm1711, %v1687, 0
        %v1755 = vsel %vm1711, %v1688, 0
        %v1758 = vsel %vm1711, %v1689, 0
        %v1761 = vsel %vm1711, %v1690, 0
        %v1764 = vsel %vm1711, %v1691, 0
        %v1767 = vsel %vm1711, %v1692, 0
        %v1770 = vsel %vm1711, %v1693, 0
        %v1773 = vsel %vm1711, %v1694, 0
        %v1776 = vsel %vm1711, %v1695, 0
        %v1779 = vsel %vm1711, %v1696, 0
        %v1782 = vsel %vm1711, %v1697, 0
        %v1785 = vsel %vm1711, %v1698, 0
        %v1788 = vsel %vm1711, %v1699, 0
        %v1791 = vsel %vm1711, %v1700, 0
        %v1794 = vsel %vm1711, %v1701, 0
        %v1797 = vsel %vm1711, %v1702, 0
        %v1800 = vsel %vm1711, %v1703, 0
        %v1803 = vsel %vm1711, %v1704, 0
        %v1806 = vsel %vm1711, %v1705, 0
        %vm1808 = vcmask 1043456
        %v1810 = vsel %vm1808, %v1710, 0
        %1812 = vmatprep.subr.mxu0 0.0
        %1813 = vmatpush1.msra.mxu0 %v1706
        %1814 = vmatprep.subr.mxu0 0.0
        %1815 = vmatpush1.msra.mxu0 %v1707
        %1816 = vmatprep.subr.mxu0 0.0
        %1817 = vmatpush1.msra.mxu0 %v1708
        %1818 = vmatprep.subr.mxu0 0.0
        %1819 = vmatpush1.msra.mxu0 %v1709
        %1820 = vmatprep.subr.mxu0 0.0
        %1821 = vmatpush1.msra.mxu0 %v1810
        %1822 = vmatprep.subr.mxu0 0.0
        %1823 = vmatpush1.msra.mxu0 0.0
        %1824 = vmatprep.subr.mxu0 0.0
        %1825 = vmatpush1.msra.mxu0 0.0
        %1826 = vmatprep.subr.mxu0 0.0
        %1827 = vmatpush1.msra.mxu0 0.0
        %1828 = vmatprep.subr.mxu0 0.0
        %1829 = vmatpush1.msra.mxu0 0.0
        %1830 = vmatprep.subr.mxu0 0.0
        %1831 = vmatpush1.msra.mxu0 0.0
        %1832 = vmatprep.subr.mxu0 0.0
        %1833 = vmatpush1.msra.mxu0 0.0
        %1834 = vmatprep.subr.mxu0 0.0
        %1835 = vmatpush1.msra.mxu0 0.0
        %1836 = vmatprep.subr.mxu0 0.0
        %1837 = vmatpush1.msra.mxu0 0.0
        %1838 = vmatprep.subr.mxu0 0.0
        %1839 = vmatpush1.msra.mxu0 0.0
        %1840 = vmatprep.subr.mxu0 0.0
        %1841 = vmatpush1.msra.mxu0 0.0
        %1842 = vmatprep.subr.mxu0 0.0
        %1843 = vmatpush1.msra.mxu0 0.0
        %1844 = vmatprep.subr.mxu0 0.0
        %1845 = vmatpush1.msra.mxu0 0.0
        %1846 = vmatprep.subr.mxu0 0.0
        %1847 = vmatpush1.msra.mxu0 0.0
        %1848 = vmatprep.subr.mxu0 0.0
        %1849 = vmatpush1.msra.mxu0 0.0
        %1850 = vmatprep.subr.mxu0 0.0
        %1851 = vmatpush1.msra.mxu0 0.0
        %1852 = vmatprep.subr.mxu0 0.0
        %1853 = vmatpush1.msra.mxu0 0.0
        %1854 = vmatprep.subr.mxu0 0.0
        %1855 = vmatpush1.msra.mxu0 0.0
        %1856 = vmatprep.subr.mxu0 0.0
        %1857 = vmatpush1.msra.mxu0 0.0
        %1858 = vmatprep.subr.mxu0 0.0
        %1859 = vmatpush1.msra.mxu0 0.0
        %1860 = vmatprep.subr.mxu0 0.0
        %1861 = vmatpush1.msra.mxu0 0.0
        %1862 = vmatprep.subr.mxu0 0.0
        %1863 = vmatpush1.msra.mxu0 0.0
        %1864 = vmatprep.subr.mxu0 0.0
        %1865 = vmatpush1.msra.mxu0 0.0
        %1866 = vmatprep.subr.mxu0 0.0
        %1867 = vmatpush1.msra.mxu0 0.0
        %1868 = vmatprep.subr.mxu0 0.0
        %1869 = vmatpush1.msra.mxu0 0.0
        %1870 = vmatprep.subr.mxu0 0.0
        %1871 = vmatpush1.msra.mxu0 0.0
        %1872 = vmatprep.subr.mxu0 0.0
        %1873 = vmatpush1.msra.mxu0 0.0
        %1874 = vmatprep.subr.mxu0 0.0
        %1875 = vmatpush1.msra.mxu0 0.0
        %1876 = vmatprep.mubr.f32.mxu0 0.0
        %1877 = vmatmul.mubr.f32.gmra.mrb[0].mxu0 %v1713
        %v1878 = vpop.f32.mrb[0].mxu0
        %v1879 = vadd.f32 0.0, %v1878
        %v1880 = vpop.f32.mrb[0].mxu0
        %1881 = vmatprep.mubr.f32.mxu0 0.0
        %1882 = vmatmul.mubr.f32.gmra.mrb[0].mxu0 %v1716
        %v1883 = vpop.f32.mrb[0].mxu0
        %v1884 = vadd.f32 0.0, %v1883
        %v1885 = vpop.f32.mrb[0].mxu0
        %1886 = vmatprep.mubr.f32.mxu0 0.0
        %1887 = vmatmul.mubr.f32.gmra.mrb[0].mxu0 %v1719
        %v1888 = vpop.f32.mrb[0].mxu0
        %v1889 = vadd.f32 0.0, %v1888
        %v1890 = vpop.f32.mrb[0].mxu0
        %1891 = vmatprep.mubr.f32.mxu0 0.0
        %1892 = vmatmul.mubr.f32.gmra.mrb[0].mxu0 %v1722
        %v1893 = vpop.f32.mrb[0].mxu0
        %v1894 = vadd.f32 0.0, %v1893
        %v1895 = vpop.f32.mrb[0].mxu0
        %1896 = vmatprep.mubr.f32.mxu0 0.0
        %1897 = vmatmul.mubr.f32.gmra.mrb[0].mxu0 %v1725
        %v1898 = vpop.f32.mrb[0].mxu0
        %v1899 = vadd.f32 0.0, %v1898
        %v1900 = vpop.f32.mrb[0].mxu0
        %1901 = vmatprep.mubr.f32.mxu0 0.0
        %1902 = vmatmul.mubr.f32.gmra.mrb[0].mxu0 %v1728
        %v1903 = vpop.f32.mrb[0].mxu0
        %v1904 = vadd.f32 0.0, %v1903
        %v1905 = vpop.f32.mrb[0].mxu0
        %1906 = vmatprep.mubr.f32.mxu0 0.0
        %1907 = vmatmul.mubr.f32.gmra.mrb[0].mxu0 %v1731
        %v1908 = vpop.f32.mrb[0].mxu0
        %v1909 = vadd.f32 0.0, %v1908
        %v1910 = vpop.f32.mrb[0].mxu0
        %1911 = vmatprep.mubr.f32.mxu0 0.0
        %1912 = vmatmul.mubr.f32.gmra.mrb[0].mxu0 %v1734
        %v1913 = vpop.f32.mrb[0].mxu0
        %v1914 = vadd.f32 0.0, %v1913
        %v1915 = vpop.f32.mrb[0].mxu0
        %1916 = vmatprep.mubr.f32.mxu0 0.0
        %1917 = vmatmul.mubr.f32.gmra.mrb[0].mxu0 %v1737
        %v1918 = vpop.f32.mrb[0].mxu0
        %v1919 = vadd.f32 0.0, %v1918
        %v1920 = vpop.f32.mrb[0].mxu0
        %1921 = vmatprep.mubr.f32.mxu0 0.0
        %1922 = vmatmul.mubr.f32.gmra.mrb[0].mxu0 %v1740
        %v1923 = vpop.f32.mrb[0].mxu0
        %v1924 = vadd.f32 0.0, %v1923
        %v1925 = vpop.f32.mrb[0].mxu0
        %1926 = vmatprep.mubr.f32.mxu0 0.0
        %1927 = vmatmul.mubr.f32.gmra.mrb[0].mxu0 %v1743
        %v1928 = vpop.f32.mrb[0].mxu0
        %v1929 = vadd.f32 0.0, %v1928
        %v1930 = vpop.f32.mrb[0].mxu0
        %1931 = vmatprep.mubr.f32.mxu0 0.0
        %1932 = vmatmul.mubr.f32.gmra.mrb[0].mxu0 %v1746
        %v1933 = vpop.f32.mrb[0].mxu0
        %v1934 = vadd.f32 0.0, %v1933
        %v1935 = vpop.f32.mrb[0].mxu0
        %1936 = vmatprep.mubr.f32.mxu0 0.0
        %1937 = vmatmul.mubr.f32.gmra.mrb[0].mxu0 %v1749
        %v1938 = vpop.f32.mrb[0].mxu0
        %v1939 = vadd.f32 0.0, %v1938
        %v1940 = vpop.f32.mrb[0].mxu0
        %1941 = vmatprep.mubr.f32.mxu0 0.0
        %1942 = vmatmul.mubr.f32.gmra.mrb[0].mxu0 %v1752
        %v1943 = vpop.f32.mrb[0].mxu0
        %v1944 = vadd.f32 0.0, %v1943
        %v1945 = vpop.f32.mrb[0].mxu0
        %1946 = vmatprep.mubr.f32.mxu0 0.0
        %1947 = vmatmul.mubr.f32.gmra.mrb[0].mxu0 %v1755
        %v1948 = vpop.f32.mrb[0].mxu0
        %v1949 = vadd.f32 0.0, %v1948
        %v1950 = vpop.f32.mrb[0].mxu0
        %1951 = vmatprep.mubr.f32.mxu0 0.0
        %1952 = vmatmul.mubr.f32.gmra.mrb[0].mxu0 %v1758
        %v1953 = vpop.f32.mrb[0].mxu0
        %v1954 = vadd.f32 0.0, %v1953
        %v1955 = vpop.f32.mrb[0].mxu0
        %1956 = vmatprep.mubr.f32.mxu0 0.0
        %1957 = vmatmul.mubr.f32.gmra.mrb[0].mxu0 %v1761
        %v1958 = vpop.f32.mrb[0].mxu0
        %v1959 = vadd.f32 0.0, %v1958
        %v1960 = vpop.f32.mrb[0].mxu0
        %1961 = vmatprep.mubr.f32.mxu0 0.0
        %1962 = vmatmul.mubr.f32.gmra.mrb[0].mxu0 %v1764
        %v1963 = vpop.f32.mrb[0].mxu0
        %v1964 = vadd.f32 0.0, %v1963
        %v1965 = vpop.f32.mrb[0].mxu0
        %1966 = vmatprep.mubr.f32.mxu0 0.0
        %1967 = vmatmul.mubr.f32.gmra.mrb[0].mxu0 %v1767
        %v1968 = vpop.f32.mrb[0].mxu0
        %v1969 = vadd.f32 0.0, %v1968
        %v1970 = vpop.f32.mrb[0].mxu0
        %1971 = vmatprep.mubr.f32.mxu0 0.0
        %1972 = vmatmul.mubr.f32.gmra.mrb[0].mxu0 %v1770
        %v1973 = vpop.f32.mrb[0].mxu0
        %v1974 = vadd.f32 0.0, %v1973
        %v1975 = vpop.f32.mrb[0].mxu0
        %1976 = vmatprep.mubr.f32.mxu0 0.0
        %1977 = vmatmul.mubr.f32.gmra.mrb[0].mxu0 %v1773
        %v1978 = vpop.f32.mrb[0].mxu0
        %v1979 = vadd.f32 0.0, %v1978
        %v1980 = vpop.f32.mrb[0].mxu0
        %1981 = vmatprep.mubr.f32.mxu0 0.0
        %1982 = vmatmul.mubr.f32.gmra.mrb[0].mxu0 %v1776
        %v1983 = vpop.f32.mrb[0].mxu0
        %v1984 = vadd.f32 0.0, %v1983
        %v1985 = vpop.f32.mrb[0].mxu0
        %1986 = vmatprep.mubr.f32.mxu0 0.0
        %1987 = vmatmul.mubr.f32.gmra.mrb[0].mxu0 %v1779
        %v1988 = vpop.f32.mrb[0].mxu0
        %v1989 = vadd.f32 0.0, %v1988
        %v1990 = vpop.f32.mrb[0].mxu0
        %1991 = vmatprep.mubr.f32.mxu0 0.0
        %1992 = vmatmul.mubr.f32.gmra.mrb[0].mxu0 %v1782
        %v1993 = vpop.f32.mrb[0].mxu0
        %v1994 = vadd.f32 0.0, %v1993
        %v1995 = vpop.f32.mrb[0].mxu0
        %1996 = vmatprep.mubr.f32.mxu0 0.0
        %1997 = vmatmul.mubr.f32.gmra.mrb[0].mxu0 %v1785
        %v1998 = vpop.f32.mrb[0].mxu0
        %v1999 = vadd.f32 0.0, %v1998
        %v2000 = vpop.f32.mrb[0].mxu0
        %2001 = vmatprep.mubr.f32.mxu0 0.0
        %2002 = vmatmul.mubr.f32.gmra.mrb[0].mxu0 %v1788
        %v2003 = vpop.f32.mrb[0].mxu0
        %v2004 = vadd.f32 0.0, %v2003
        %v2005 = vpop.f32.mrb[0].mxu0
        %2006 = vmatprep.mubr.f32.mxu0 0.0
        %2007 = vmatmul.mubr.f32.gmra.mrb[0].mxu0 %v1791
        %v2008 = vpop.f32.mrb[0].mxu0
        %v2009 = vadd.f32 0.0, %v2008
        %v2010 = vpop.f32.mrb[0].mxu0
        %2011 = vmatprep.mubr.f32.mxu0 0.0
        %2012 = vmatmul.mubr.f32.gmra.mrb[0].mxu0 %v1794
        %v2013 = vpop.f32.mrb[0].mxu0
        %v2014 = vadd.f32 0.0, %v2013
        %v2015 = vpop.f32.mrb[0].mxu0
        %2016 = vmatprep.mubr.f32.mxu0 0.0
        %2017 = vmatmul.mubr.f32.gmra.mrb[0].mxu0 %v1797
        %v2018 = vpop.f32.mrb[0].mxu0
        %v2019 = vadd.f32 0.0, %v2018
        %v2020 = vpop.f32.mrb[0].mxu0
        %2021 = vmatprep.mubr.f32.mxu0 0.0
        %2022 = vmatmul.mubr.f32.gmra.mrb[0].mxu0 %v1800
        %v2023 = vpop.f32.mrb[0].mxu0
        %v2024 = vadd.f32 0.0, %v2023
        %v2025 = vpop.f32.mrb[0].mxu0
        %2026 = vmatprep.mubr.f32.mxu0 0.0
        %2027 = vmatmul.mubr.f32.gmra.mrb[0].mxu0 %v1803
        %v2028 = vpop.f32.mrb[0].mxu0
        %v2029 = vadd.f32 0.0, %v2028
        %v2030 = vpop.f32.mrb[0].mxu0
        %2031 = vmatprep.mubr.f32.mxu0 0.0
        %2032 = vmatmul.mubr.f32.gmra.mrb[0].mxu0 %v1806
        %v2033 = vpop.f32.mrb[0].mxu0
        %v2034 = vadd.f32 0.0, %v2033
        %v2035 = vpop.f32.mrb[0].mxu0
        %2036 = vdwg.mxu0
        %2037 = vst.msk [vmem:[%s208] sm:$0xff] %vm241, %v1879
        %2038 = vst.msk [vmem:[%s208 + $0x8] sm:$0xff] %vm241, %v1884
        %2039 = vst.msk [vmem:[%s208 + $0x10] sm:$0xff] %vm241, %v1889
        %2040 = vst.msk [vmem:[%s208 + $0x18] sm:$0xff] %vm241, %v1894
        %2041 = vst.msk [vmem:[%s208 + $0x20] sm:$0xff] %vm241, %v1899
        %2042 = vst.msk [vmem:[%s208 + $0x28] sm:$0xff] %vm241, %v1904
        %2043 = vst.msk [vmem:[%s208 + $0x30] sm:$0xff] %vm241, %v1909
        %2044 = vst.msk [vmem:[%s208 + $0x38] sm:$0xff] %vm241, %v1914
        %2045 = vst.msk [vmem:[%s208 + $0x40] sm:$0xff] %vm241, %v1919
        %2046 = vst.msk [vmem:[%s208 + $0x48] sm:$0xff] %vm241, %v1924
        %2047 = vst.msk [vmem:[%s208 + $0x50] sm:$0xff] %vm241, %v1929
        %2048 = vst.msk [vmem:[%s208 + $0x58] sm:$0xff] %vm241, %v1934
        %2049 = vst.msk [vmem:[%s208 + $0x60] sm:$0xff] %vm241, %v1939
        %2050 = vst.msk [vmem:[%s208 + $0x68] sm:$0xff] %vm241, %v1944
        %2051 = vst.msk [vmem:[%s208 + $0x70] sm:$0xff] %vm241, %v1949
        %2052 = vst.msk [vmem:[%s208 + $0x78] sm:$0xff] %vm241, %v1954
        %2053 = vst.msk [vmem:[%s208 + $0x80] sm:$0xff] %vm241, %v1959
        %2054 = vst.msk [vmem:[%s208 + $0x88] sm:$0xff] %vm241, %v1964
        %2055 = vst.msk [vmem:[%s208 + $0x90] sm:$0xff] %vm241, %v1969
        %2056 = vst.msk [vmem:[%s208 + $0x98] sm:$0xff] %vm241, %v1974
        %2057 = vst.msk [vmem:[%s208 + $0xa0] sm:$0xff] %vm241, %v1979
        %2058 = vst.msk [vmem:[%s208 + $0xa8] sm:$0xff] %vm241, %v1984
        %2059 = vst.msk [vmem:[%s208 + $0xb0] sm:$0xff] %vm241, %v1989
        %2060 = vst.msk [vmem:[%s208 + $0xb8] sm:$0xff] %vm241, %v1994
        %2061 = vst.msk [vmem:[%s208 + $0xc0] sm:$0xff] %vm241, %v1999
        %2062 = vst.msk [vmem:[%s208 + $0xc8] sm:$0xff] %vm241, %v2004
        %2063 = vst.msk [vmem:[%s208 + $0xd0] sm:$0xff] %vm241, %v2009
        %2064 = vst.msk [vmem:[%s208 + $0xd8] sm:$0xff] %vm241, %v2014
        %2065 = vst.msk [vmem:[%s208 + $0xe0] sm:$0xff] %vm241, %v2019
        %2066 = vst.msk [vmem:[%s208 + $0xe8] sm:$0xff] %vm241, %v2024
        %2067 = vst.msk [vmem:[%s208 + $0xf0] sm:$0xff] %vm241, %v2029
        %2068 = vst.msk [vmem:[%s208 + $0xf8] sm:$0xff] %vm241, %v2034
        %v2069 = vsel %vm241, %v1879, 0.0
        %v2070 = vsel %vm241, %v1884, 0.0
        %v2071 = vadd.f32 %v2069, %v2070
        %v2072 = vsel %vm241, %v1889, 0.0
        %v2073 = vadd.f32 %v2071, %v2072
        %v2074 = vsel %vm241, %v1894, 0.0
        %v2075 = vadd.f32 %v2073, %v2074
        %v2076 = vsel %vm241, %v1899, 0.0
        %v2077 = vadd.f32 %v2075, %v2076
        %v2078 = vsel %vm241, %v1904, 0.0
        %v2079 = vadd.f32 %v2077, %v2078
        %v2080 = vsel %vm241, %v1909, 0.0
        %v2081 = vadd.f32 %v2079, %v2080
        %v2082 = vsel %vm241, %v1914, 0.0
        %v2083 = vadd.f32 %v2081, %v2082
        %v2084 = vsel %vm241, %v1919, 0.0
        %v2085 = vadd.f32 %v2083, %v2084
        %v2086 = vsel %vm241, %v1924, 0.0
        %v2087 = vadd.f32 %v2085, %v2086
        %v2088 = vsel %vm241, %v1929, 0.0
        %v2089 = vadd.f32 %v2087, %v2088
        %v2090 = vsel %vm241, %v1934, 0.0
        %v2091 = vadd.f32 %v2089, %v2090
        %v2092 = vsel %vm241, %v1939, 0.0
        %v2093 = vadd.f32 %v2091, %v2092
        %v2094 = vsel %vm241, %v1944, 0.0
        %v2095 = vadd.f32 %v2093, %v2094
        %v2096 = vsel %vm241, %v1949, 0.0
        %v2097 = vadd.f32 %v2095, %v2096
        %v2098 = vsel %vm241, %v1954, 0.0
        %v2099 = vadd.f32 %v2097, %v2098
        %v2100 = vsel %vm241, %v1959, 0.0
        %v2101 = vadd.f32 %v2099, %v2100
        %v2102 = vsel %vm241, %v1964, 0.0
        %v2103 = vadd.f32 %v2101, %v2102
        %v2104 = vsel %vm241, %v1969, 0.0
        %v2105 = vadd.f32 %v2103, %v2104
        %v2106 = vsel %vm241, %v1974, 0.0
        %v2107 = vadd.f32 %v2105, %v2106
        %v2108 = vsel %vm241, %v1979, 0.0
        %v2109 = vadd.f32 %v2107, %v2108
        %v2110 = vsel %vm241, %v1984, 0.0
        %v2111 = vadd.f32 %v2109, %v2110
        %v2112 = vsel %vm241, %v1989, 0.0
        %v2113 = vadd.f32 %v2111, %v2112
        %v2114 = vsel %vm241, %v1994, 0.0
        %v2115 = vadd.f32 %v2113, %v2114
        %v2116 = vsel %vm241, %v1999, 0.0
        %v2117 = vadd.f32 %v2115, %v2116
        %v2118 = vsel %vm241, %v2004, 0.0
        %v2119 = vadd.f32 %v2117, %v2118
        %v2120 = vsel %vm241, %v2009, 0.0
        %v2121 = vadd.f32 %v2119, %v2120
        %v2122 = vsel %vm241, %v2014, 0.0
        %v2123 = vadd.f32 %v2121, %v2122
        %v2124 = vsel %vm241, %v2019, 0.0
        %v2125 = vadd.f32 %v2123, %v2124
        %v2126 = vsel %vm241, %v2024, 0.0
        %v2127 = vadd.f32 %v2125, %v2126
        %v2128 = vsel %vm241, %v2029, 0.0
        %v2129 = vadd.f32 %v2127, %v2128
        %v2130 = vsel %vm241, %v2034, 0.0
        %v2131 = vadd.f32 %v2129, %v2130
        %v2132 = vrot.slane %v2131, 4
        %v2133 = vadd.f32 %v2131, %v2132
        %v2134 = vrot.slane %v2133, 2
        %v2135 = vadd.f32 %v2133, %v2134
        %v2136 = vrot.slane %v2135, 1
        %v2137 = vadd.f32 %v2135, %v2136
        %2138 = vst.msk [vmem:[%s198] sm:$0x1] %vm250, %v2137
        %v2139 = vmul.f32 %v1879, %v1879
        %v2140 = vmul.f32 %v1884, %v1884
        %v2141 = vmul.f32 %v1889, %v1889
        %v2142 = vmul.f32 %v1894, %v1894
        %v2143 = vmul.f32 %v1899, %v1899
        %v2144 = vmul.f32 %v1904, %v1904
        %v2145 = vmul.f32 %v1909, %v1909
        %v2146 = vmul.f32 %v1914, %v1914
        %v2147 = vmul.f32 %v1919, %v1919
        %v2148 = vmul.f32 %v1924, %v1924
        %v2149 = vmul.f32 %v1929, %v1929
        %v2150 = vmul.f32 %v1934, %v1934
        %v2151 = vmul.f32 %v1939, %v1939
        %v2152 = vmul.f32 %v1944, %v1944
        %v2153 = vmul.f32 %v1949, %v1949
        %v2154 = vmul.f32 %v1954, %v1954
        %v2155 = vmul.f32 %v1959, %v1959
        %v2156 = vmul.f32 %v1964, %v1964
        %v2157 = vmul.f32 %v1969, %v1969
        %v2158 = vmul.f32 %v1974, %v1974
        %v2159 = vmul.f32 %v1979, %v1979
        %v2160 = vmul.f32 %v1984, %v1984
        %v2161 = vmul.f32 %v1989, %v1989
        %v2162 = vmul.f32 %v1994, %v1994
        %v2163 = vmul.f32 %v1999, %v1999
        %v2164 = vmul.f32 %v2004, %v2004
        %v2165 = vmul.f32 %v2009, %v2009
        %v2166 = vmul.f32 %v2014, %v2014
        %v2167 = vmul.f32 %v2019, %v2019
        %v2168 = vmul.f32 %v2024, %v2024
        %v2169 = vmul.f32 %v2029, %v2029
        %v2170 = vmul.f32 %v2034, %v2034
        %v2171 = vsel %vm241, %v2139, 0.0
        %v2172 = vsel %vm241, %v2140, 0.0
        %v2173 = vadd.f32 %v2171, %v2172
        %v2174 = vsel %vm241, %v2141, 0.0
        %v2175 = vadd.f32 %v2173, %v2174
        %v2176 = vsel %vm241, %v2142, 0.0
        %v2177 = vadd.f32 %v2175, %v2176
        %v2178 = vsel %vm241, %v2143, 0.0
        %v2179 = vadd.f32 %v2177, %v2178
        %v2180 = vsel %vm241, %v2144, 0.0
        %v2181 = vadd.f32 %v2179, %v2180
        %v2182 = vsel %vm241, %v2145, 0.0
        %v2183 = vadd.f32 %v2181, %v2182
        %v2184 = vsel %vm241, %v2146, 0.0
        %v2185 = vadd.f32 %v2183, %v2184
        %v2186 = vsel %vm241, %v2147, 0.0
        %v2187 = vadd.f32 %v2185, %v2186
        %v2188 = vsel %vm241, %v2148, 0.0
        %v2189 = vadd.f32 %v2187, %v2188
        %v2190 = vsel %vm241, %v2149, 0.0
        %v2191 = vadd.f32 %v2189, %v2190
        %v2192 = vsel %vm241, %v2150, 0.0
        %v2193 = vadd.f32 %v2191, %v2192
        %v2194 = vsel %vm241, %v2151, 0.0
        %v2195 = vadd.f32 %v2193, %v2194
        %v2196 = vsel %vm241, %v2152, 0.0
        %v2197 = vadd.f32 %v2195, %v2196
        %v2198 = vsel %vm241, %v2153, 0.0
        %v2199 = vadd.f32 %v2197, %v2198
        %v2200 = vsel %vm241, %v2154, 0.0
        %v2201 = vadd.f32 %v2199, %v2200
        %v2202 = vsel %vm241, %v2155, 0.0
        %v2203 = vadd.f32 %v2201, %v2202
        %v2204 = vsel %vm241, %v2156, 0.0
        %v2205 = vadd.f32 %v2203, %v2204
        %v2206 = vsel %vm241, %v2157, 0.0
        %v2207 = vadd.f32 %v2205, %v2206
        %v2208 = vsel %vm241, %v2158, 0.0
        %v2209 = vadd.f32 %v2207, %v2208
        %v2210 = vsel %vm241, %v2159, 0.0
        %v2211 = vadd.f32 %v2209, %v2210
        %v2212 = vsel %vm241, %v2160, 0.0
        %v2213 = vadd.f32 %v2211, %v2212
        %v2214 = vsel %vm241, %v2161, 0.0
        %v2215 = vadd.f32 %v2213, %v2214
        %v2216 = vsel %vm241, %v2162, 0.0
        %v2217 = vadd.f32 %v2215, %v2216
        %v2218 = vsel %vm241, %v2163, 0.0
        %v2219 = vadd.f32 %v2217, %v2218
        %v2220 = vsel %vm241, %v2164, 0.0
        %v2221 = vadd.f32 %v2219, %v2220
        %v2222 = vsel %vm241, %v2165, 0.0
        %v2223 = vadd.f32 %v2221, %v2222
        %v2224 = vsel %vm241, %v2166, 0.0
        %v2225 = vadd.f32 %v2223, %v2224
        %v2226 = vsel %vm241, %v2167, 0.0
        %v2227 = vadd.f32 %v2225, %v2226
        %v2228 = vsel %vm241, %v2168, 0.0
        %v2229 = vadd.f32 %v2227, %v2228
        %v2230 = vsel %vm241, %v2169, 0.0
        %v2231 = vadd.f32 %v2229, %v2230
        %v2232 = vsel %vm241, %v2170, 0.0
        %v2233 = vadd.f32 %v2231, %v2232
        %v2234 = vrot.slane %v2233, 4
        %v2235 = vadd.f32 %v2233, %v2234
        %v2236 = vrot.slane %v2235, 2
        %v2237 = vadd.f32 %v2235, %v2236
        %v2238 = vrot.slane %v2237, 1
        %v2239 = vadd.f32 %v2237, %v2238
        %2240 = vst.msk [vmem:[%s198 + $0x1] sm:$0x1] %vm250, %v2239
        %p2241 = scmp.lt.s32.totalorder %s19, 1
        %s2242 = scalar_select %p2241, %s19, 1
        %s2243 = smul.addr %s2242, 32
        %s2244 = smul.addr %s2243, 8
        %s2245 = scalar_lea.vmem %s3, %s2244
        %s2246 = sand.u32 %s121, 1
        %s2247 = scalar_lea.sflag [#allocation5], %s2246
        %s2248 = sand.u32 %s121, 1
        %s2249 = smul.addr %s2248, 2
        %s2250 = scalar_lea.vmem [#allocation4], %s2249
        // Predicated region
        $region33: #{tpu_custom_call.1} parent=31 // pred_check
          %p2251 = pneg %p105
        $region34: #{tpu_custom_call.1} parent=31 // pred_check_branch
          %2253 = sbr.rel (%p2251) target = $region36
        $region35: #{tpu_custom_call.1} parent=31 // pred_region
          _
        $region36: #{tpu_custom_call.1} parent=31 // pred_fallthru
          _
        // Predicated region
        $region37: #{tpu_custom_call.1} parent=31 // pred_check
          %p2254 = pneg %p131
        $region38: #{tpu_custom_call.1} parent=31 // pred_check_branch
          %2256 = sbr.rel (%p2254) target = $region40
        $region39: #{tpu_custom_call.1} parent=31 // pred_region
          %s2258 = ssub.s32 32, 32
          %2259 = vsyncadd %s2247, %s2258
          %s2260 = smul.addr %s19, 32
          %s2261 = scalar_lea.hbm %s4, %s2260
          %s2263 = sshll.u32 %s2250, 4
          %s2264 = int_to_ptr.vmem [resolvable:$true] %s2263
          %2266 = dma.vmem_to_hbm [thread:$0]  %s2264, 32, %s2261, %s2247
        $region40: #{tpu_custom_call.1} parent=31 // pred_fallthru
          _
      $region32: #{tpu_custom_call.1} parent=5 // pred_fallthru
        _
      %p2267 = scmp.le.s32.totalorder 2, %s14
      // Predicated region
      $region41: #{tpu_custom_call.1} parent=5 // pred_check
        %p2268 = pneg %p2267
      $region42: #{tpu_custom_call.1} parent=5 // pred_check_branch
        %2270 = sbr.rel (%p2268) target = $region44
      $region43: #{tpu_custom_call.1} parent=5 // pred_region
        %s2271 = ssub.s32 %s14, 2
        // Predicated region
        $region45: #{tpu_custom_call.1} parent=43 // pred_check
          %p2272 = pneg %p111
        $region46: #{tpu_custom_call.1} parent=43 // pred_check_branch
          %2274 = sbr.rel (%p2272) target = $region48
        $region47: #{tpu_custom_call.1} parent=43 // pred_region
          %p2275 = scmp.lt.s32.totalorder %s20, 1
          %s2276 = scalar_select %p2275, %s20, 1
          %s2277 = smul.addr %s2276, 32
          %s2278 = smul.addr %s2277, 8
          %s2279 = scalar_lea.vmem %s3, %s2278
        $region48: #{tpu_custom_call.1} parent=43 // pred_fallthru
          _
        // Predicated region
        $region49: #{tpu_custom_call.1} parent=43 // pred_check
          %p2280 = pneg %p137
        $region50: #{tpu_custom_call.1} parent=43 // pred_check_branch
          %2282 = sbr.rel (%p2280) target = $region52
        $region51: #{tpu_custom_call.1} parent=43 // pred_region
          %s2283 = sand.u32 %s122, 1
          %s2284 = scalar_lea.sflag [#allocation5], %s2283
          %s2285 = sand.u32 %s122, 1
          %s2286 = smul.addr %s2285, 2
          %s2287 = scalar_lea.vmem [#allocation4], %s2286
          %2288 = dma.done %s2284, 32
        $region52: #{tpu_custom_call.1} parent=43 // pred_fallthru
          _
      $region44: #{tpu_custom_call.1} parent=5 // pred_fallthru
        _
    $region6: #{tpu_custom_call.1} parent=1 // loop_footer
      %s18 = sadd.s32 1, %s14
    $region7: #{tpu_custom_call.1} parent=1 // loop_footer_branch
      %13 = sbr.rel target = $region3
    $region8: #{tpu_custom_call.1} parent=1 // loop_exit
      _
    %2289 = vsyncpa [#allocation5], 1
    %s2290 = scalar_lea.sflag [#allocation5], 1
    %2291 = vsyncpa %s2290, 1

</llo_original>
